<compile_context>
chip_gen: v7x
topology: tpu7x:2x2x1
jax: 0.10.0
libtpu: 0.0.40
codegen_flags: <defaults>
</compile_context>

<pallas_src>
import jax
import jax.numpy as jnp
from jax.experimental import pallas as pl
from jax.experimental.pallas import tpu as pltpu


def _sigmoid(v):
    # One EUP op (tanh) instead of exp + exact divide.
    return 0.5 * (jnp.tanh(0.5 * v) + 1.0)


def gru_layer_kernel(x_ref, h_ref,
                     w_rz_ref, b_rz_ref,
                     w_xn_ref, b_xn_ref,
                     w_hn_ref, b_hn_ref,
                     w_fc_ref, b_fc_ref,
                     out_ref, state_ref):
    """One batch tile: h' = GRU(x, h); out = h' @ W_fc + b_fc."""
    D = x_ref.shape[-1]
    x = x_ref[...]                       # (tb, D)  bf16 streaming input
    h32 = h_ref[...]                     # (tb, D)  f32 carried hidden state
    h = h32.astype(x.dtype)              # bf16 operand for the MXU

    # r/z gates: one fused K=2D matmul over [x | h] (bias already pre-summed).
    xh = jnp.concatenate([x, h], axis=-1)                       # (tb, 2D)
    g_rz = jnp.dot(xh, w_rz_ref[...],
                   preferred_element_type=jnp.float32) + b_rz_ref[...]
    r = _sigmoid(g_rz[:, :D])
    z = _sigmoid(g_rz[:, D:])

    # n gate: r applied to (W_hn·h + b_hn) per the PyTorch GRU definition.
    gh_n = jnp.dot(h, w_hn_ref[...],
                   preferred_element_type=jnp.float32) + b_hn_ref[...]
    gx_n = jnp.dot(x, w_xn_ref[...],
                   preferred_element_type=jnp.float32) + b_xn_ref[...]
    n = jnp.tanh(gx_n + r * gh_n)

    h_new = n + z * (h32 - n)            # == (1 - z) * n + z * h  (f32 blend)
    state_ref[...] = h_new.astype(state_ref.dtype)

    out = jnp.dot(h_new.astype(w_fc_ref.dtype), w_fc_ref[...],
                  preferred_element_type=jnp.float32) + b_fc_ref[...]
    out_ref[...] = out.astype(out_ref.dtype)


def _round_up(a, m):
    return (a + m - 1) // m * m


def prepare_gru_params(w_ih, b_ih, w_hh, b_hh, w_fc, b_fc,
                       compute_dtype=jnp.bfloat16):
    """One-time layout/dtype prep from PyTorch-convention (out, in) weights.

    Returns (w_rz, b_rz, w_xn, b_xn, w_hn, b_hn, w_fc_t, b_fc2):
      w_rz   : (2D, 2D) bf16  stacked [W_ih_rz ; W_hh_rz] (columns [r | z])
      b_rz   : (1, 2D)  f32   b_ih_rz + b_hh_rz (pre-summed)
      w_xn   : (D, D)   bf16  W_ih_n^T      b_xn : (1, D) f32
      w_hn   : (D, D)   bf16  W_hh_n^T      b_hn : (1, D) f32
      w_fc_t : (D, D)   bf16  W_fc^T        b_fc2: (1, D) f32
    """
    D = w_fc.shape[0]
    assert w_ih.shape == (3 * D, D) and w_hh.shape == (3 * D, D)
    w_ih_t = w_ih.T                                  # (D, 3D), columns [r|z|n]
    w_hh_t = w_hh.T
    w_rz = jnp.concatenate([w_ih_t[:, :2 * D], w_hh_t[:, :2 * D]],
                           axis=0).astype(compute_dtype)         # (2D, 2D)
    b_rz = (b_ih[:2 * D] + b_hh[:2 * D]).reshape(1, 2 * D).astype(jnp.float32)
    w_xn = w_ih_t[:, 2 * D:].astype(compute_dtype)               # (D, D)
    b_xn = b_ih[2 * D:].reshape(1, D).astype(jnp.float32)
    w_hn = w_hh_t[:, 2 * D:].astype(compute_dtype)               # (D, D)
    b_hn = b_hh[2 * D:].reshape(1, D).astype(jnp.float32)
    w_fc_t = w_fc.T.astype(compute_dtype)                        # (D, D)
    b_fc2 = b_fc.reshape(1, D).astype(jnp.float32)
    return (w_rz, b_rz, w_xn, b_xn, w_hn, b_hn, w_fc_t, b_fc2)


def gru_layer_forward(x, params, previous_state=None, *, tile_b=256):
    """JAX wrapper reproducing GRULayer.forward.

    x              : (B, ...) — flattened to (B, D) if rank > 2.
    params         : output of prepare_gru_params (bf16 weights, f32 biases).
    previous_state : optional (1, B, D) hidden state (defaults to zeros).
    Returns (output (B, D) f32, state (1, B, D) f32).
    """
    w_rz, b_rz, w_xn, b_xn, w_hn, b_hn, w_fc_t, b_fc2 = params
    if x.ndim > 2:
        x = x.reshape(x.shape[0], -1)
    B, D = x.shape
    compute_dtype = w_rz.dtype
    assert w_rz.shape == (2 * D, 2 * D) and w_fc_t.shape == (D, D)
    # NOTE: for best layout, D should be a multiple of 128 (lane width); other
    # D still works but triggers relayout copies / masked partial stores.

    if previous_state is None:
        h0 = jnp.zeros((B, D), dtype=jnp.float32)
    else:
        h0 = previous_state.reshape(B, D).astype(jnp.float32)

    x_c = x.astype(compute_dtype)        # bf16 streaming input (halves DMA)

    # Pad the batch only to the 8-sublane granule (NOT up to tile_b); the grid
    # handles a ragged last tile.
    B_pad = _round_up(B, 8)
    if B_pad != B:
        pad = ((0, B_pad - B), (0, 0))
        x_c = jnp.pad(x_c, pad)
        h0 = jnp.pad(h0, pad)

    tb = max(8, min(_round_up(tile_b, 8), B_pad))
    grid = (pl.cdiv(B_pad, tb),)

    # ---- explicit VMEM budget (review item: vmem_limit_bytes) ----------------
    itemsize_c = x_c.dtype.itemsize
    w_bytes = sum(int(a.size) * a.dtype.itemsize
                  for a in (w_rz, w_xn, w_hn, w_fc_t, b_rz, b_xn, b_hn, b_fc2))
    stream_bytes = tb * D * (itemsize_c + 3 * 4)      # x(bf16) + h/out/state f32
    interm_bytes = 12 * tb * D * 4                    # f32 gate-math working set
    vmem_limit = int(1.5 * (2 * w_bytes + 2 * stream_bytes + interm_bytes)) + (4 << 20)
    vmem_limit = max(16 << 20, min(vmem_limit, 100 << 20))
    assert 2 * w_bytes <= (48 << 20), (
        "weight-resident design would not fit VMEM at this D; "
        "TODO(synk): tile the 3D gate-column axis for very large input_dim")

    flops = 14 * B_pad * D * D            # fused rz (8BD^2) + n gates (4BD^2) + fc (2BD^2)
    cost = pl.CostEstimate(
        flops=flops,
        transcendentals=3 * B_pad * D,    # 2 sigmoid-as-tanh + 1 tanh per element
        bytes_accessed=int(w_bytes + B_pad * D * (itemsize_c + 3 * 4)),
    )

    def _run(single_buffer_weights):
        def wspec(shape):
            kwargs = ({"pipeline_mode": pl.Buffered(1)}
                      if single_buffer_weights else {})
            return pl.BlockSpec(shape, lambda i: (0, 0), **kwargs)

        return pl.pallas_call(
            gru_layer_kernel,
            out_shape=(
                jax.ShapeDtypeStruct((B_pad, D), jnp.float32),   # fc output
                jax.ShapeDtypeStruct((B_pad, D), jnp.float32),   # new hidden state
            ),
            grid=grid,
            in_specs=[
                pl.BlockSpec((tb, D), lambda i: (i, 0)),   # x      (streams, bf16)
                pl.BlockSpec((tb, D), lambda i: (i, 0)),   # h0     (streams, f32)
                wspec((2 * D, 2 * D)),                     # w_rz   (VMEM-resident)
                wspec((1, 2 * D)),                         # b_rz
                wspec((D, D)),                             # w_xn
                wspec((1, D)),                             # b_xn
                wspec((D, D)),                             # w_hn
                wspec((1, D)),                             # b_hn
                wspec((D, D)),                             # w_fc_t
                wspec((1, D)),                             # b_fc
            ],
            out_specs=(
                pl.BlockSpec((tb, D), lambda i: (i, 0)),   # output (streams)
                pl.BlockSpec((tb, D), lambda i: (i, 0)),   # state  (streams)
            ),
            compiler_params=pltpu.CompilerParams(
                # Batch tiles are independent -> shard across v7x's 2 TCs when
                # the grid has >= 2 tiles.
                dimension_semantics=("parallel",),
                vmem_limit_bytes=vmem_limit,
            ),
            cost_estimate=cost,
        )(x_c, h0, w_rz, b_rz, w_xn, b_xn, w_hn, b_hn, w_fc_t, b_fc2)

    try:
        out, state = _run(single_buffer_weights=True)
    except Exception:
        # Fallback for JAX builds that reject pipeline_mode=pl.Buffered(1).
        out, state = _run(single_buffer_weights=False)

    out = out[:B]
    state = state[:B].reshape(1, B, D)
    return out, state


def _reference_forward(x, w_ih, b_ih, w_hh, b_hh, w_fc, b_fc, previous_state=None):
    """Pure-JAX f32 reference with PyTorch-convention (out, in) weights."""
    if x.ndim > 2:
        x = x.reshape(x.shape[0], -1)
    B, D = x.shape
    h = (jnp.zeros((B, D), jnp.float32) if previous_state is None
         else previous_state.reshape(B, D).astype(jnp.float32))
    x = x.astype(jnp.float32)
    gx = x @ w_ih.T + b_ih
    gh = h @ w_hh.T + b_hh
    r = 1.0 / (1.0 + jnp.exp(-(gx[:, :D] + gh[:, :D])))
    z = 1.0 / (1.0 + jnp.exp(-(gx[:, D:2 * D] + gh[:, D:2 * D])))
    n = jnp.tanh(gx[:, 2 * D:] + r * gh[:, 2 * D:])
    h_new = (1.0 - z) * n + z * h
    out = h_new @ w_fc.T + b_fc
    return out, h_new.reshape(1, B, D)


if __name__ == "__main__":
    key = jax.random.PRNGKey(0)
    keys = jax.random.split(key, 7)

    B = 2
    D = 128  # input_dim after flatten: 8 * 16 (GRU hidden == input per the module)

    # Example input with extra dims — forward flattens it to (B, D).
    x = jax.random.normal(keys[0], (B, 8, 16), dtype=jnp.float32)

    # PyTorch-convention parameters, uniform(-1/sqrt(D), 1/sqrt(D)).
    bound = 1.0 / jnp.sqrt(D)
    w_ih = jax.random.uniform(keys[1], (3 * D, D), jnp.float32, -bound, bound)
    b_ih = jax.random.uniform(keys[2], (3 * D,), jnp.float32, -bound, bound)
    w_hh = jax.random.uniform(keys[3], (3 * D, D), jnp.float32, -bound, bound)
    b_hh = jax.random.uniform(keys[4], (3 * D,), jnp.float32, -bound, bound)
    w_fc = jax.random.uniform(keys[5], (D, D), jnp.float32, -bound, bound)
    b_fc = jax.random.uniform(keys[6], (D,), jnp.float32, -bound, bound)

    # One-time weight prep (transpose + bf16 + r/z stacking) outside the hot path.
    params = prepare_gru_params(w_ih, b_ih, w_hh, b_hh, w_fc, b_fc)

    # Step 1: default (zero) previous state.
    out, state = gru_layer_forward(x, params)
    out = jax.block_until_ready(out)
    state = jax.block_until_ready(state)
    assert out.shape == (B, D), out.shape
    assert state.shape == (1, B, D), state.shape

    ref_out, ref_state = _reference_forward(x, w_ih, b_ih, w_hh, b_hh, w_fc, b_fc)
    # bf16 MXU operands -> slightly looser tolerance than a pure-f32 run.
    assert jnp.allclose(out, ref_out, atol=3e-2, rtol=3e-2), "output mismatch vs reference"
    assert jnp.allclose(state, ref_state, atol=3e-2, rtol=3e-2), "state mismatch vs reference"

    # Step 2: carried (non-zero) previous state.
    out2, state2 = gru_layer_forward(x, params, previous_state=state)
    out2 = jax.block_until_ready(out2)
    state2 = jax.block_until_ready(state2)
    ref_out2, ref_state2 = _reference_forward(x, w_ih, b_ih, w_hh, b_hh, w_fc, b_fc,
                                              previous_state=ref_state)
    assert jnp.allclose(out2, ref_out2, atol=3e-2, rtol=3e-2), "step-2 output mismatch"
    assert jnp.allclose(state2, ref_state2, atol=3e-2, rtol=3e-2), "step-2 state mismatch"

    print("KERNEL_OK")
</pallas_src>

<mosaic_0001>
module attributes {stable_mosaic.version = 11 : i64} {
  func.func @gru_layer_kernel(%arg0: i32, %arg1: memref<8x128xbf16, #tpu.memory_space<vmem>>, %arg2: memref<8x128xf32, #tpu.memory_space<vmem>>, %arg3: memref<256x256xbf16, #tpu.memory_space<vmem>>, %arg4: memref<1x256xf32, #tpu.memory_space<vmem>>, %arg5: memref<128x128xbf16, #tpu.memory_space<vmem>>, %arg6: memref<1x128xf32, #tpu.memory_space<vmem>>, %arg7: memref<128x128xbf16, #tpu.memory_space<vmem>>, %arg8: memref<1x128xf32, #tpu.memory_space<vmem>>, %arg9: memref<128x128xbf16, #tpu.memory_space<vmem>>, %arg10: memref<1x128xf32, #tpu.memory_space<vmem>>, %arg11: memref<8x128xf32, #tpu.memory_space<vmem>>, %arg12: memref<8x128xf32, #tpu.memory_space<vmem>>) attributes {dimension_semantics = [#tpu.dimension_semantics<parallel>], iteration_bounds = array<i64: 1>, scalar_prefetch = 0 : i64, scratch_operands = 0 : i64, tpu.core_type = #tpu.core_type<tc>, window_params = [{transform_indices = @transform_0, window_bounds = array<i64: 8, 128>}, {transform_indices = @transform_1, window_bounds = array<i64: 8, 128>}, {pipeline_mode = #tpu.pipeline_mode<synchronous>, transform_indices = @transform_2, window_bounds = array<i64: 256, 256>}, {pipeline_mode = #tpu.pipeline_mode<synchronous>, transform_indices = @transform_3, window_bounds = array<i64: 1, 256>}, {pipeline_mode = #tpu.pipeline_mode<synchronous>, transform_indices = @transform_4, window_bounds = array<i64: 128, 128>}, {pipeline_mode = #tpu.pipeline_mode<synchronous>, transform_indices = @transform_5, window_bounds = array<i64: 1, 128>}, {pipeline_mode = #tpu.pipeline_mode<synchronous>, transform_indices = @transform_6, window_bounds = array<i64: 128, 128>}, {pipeline_mode = #tpu.pipeline_mode<synchronous>, transform_indices = @transform_7, window_bounds = array<i64: 1, 128>}, {pipeline_mode = #tpu.pipeline_mode<synchronous>, transform_indices = @transform_8, window_bounds = array<i64: 128, 128>}, {pipeline_mode = #tpu.pipeline_mode<synchronous>, transform_indices = @transform_9, window_bounds = array<i64: 1, 128>}, {transform_indices = @transform_10, window_bounds = array<i64: 8, 128>}, {transform_indices = @transform_11, window_bounds = array<i64: 8, 128>}]} {
    %c0 = arith.constant 0 : index
    %c0_0 = arith.constant 0 : index
    %0 = vector.load %arg1[%c0, %c0_0] : memref<8x128xbf16, #tpu.memory_space<vmem>>, vector<8x128xbf16>
    %c0_1 = arith.constant 0 : index
    %c0_2 = arith.constant 0 : index
    %1 = vector.load %arg2[%c0_1, %c0_2] : memref<8x128xf32, #tpu.memory_space<vmem>>, vector<8x128xf32>
    %2 = arith.truncf %1 : vector<8x128xf32> to vector<8x128xbf16>
    %3 = tpu.concatenate %0, %2 in 1 : vector<8x128xbf16>, vector<8x128xbf16> -> vector<8x256xbf16>
    %c0_3 = arith.constant 0 : index
    %c0_4 = arith.constant 0 : index
    %4 = vector.load %arg3[%c0_3, %c0_4] : memref<256x256xbf16, #tpu.memory_space<vmem>>, vector<256x256xbf16>
    %cst = arith.constant dense<0.000000e+00> : vector<8x256xf32>
    %5 = tpu.matmul %3, %4, %cst {dimension_numbers = #tpu.dot_dimension_numbers<[1], [0], [0], [1], [0, 0, 1, 1], [], []>} : vector<8x256xbf16>, vector<256x256xbf16>, vector<8x256xf32> -> vector<8x256xf32>
    %c0_5 = arith.constant 0 : index
    %c0_6 = arith.constant 0 : index
    %6 = vector.load %arg4[%c0_5, %c0_6] : memref<1x256xf32, #tpu.memory_space<vmem>>, vector<1x256xf32>
    %7 = vector.broadcast %6 : vector<1x256xf32> to vector<8x256xf32>
    %8 = arith.addf %5, %7 : vector<8x256xf32>
    %9 = vector.extract_strided_slice %8 {offsets = [0, 0], sizes = [8, 128], strides = [1, 1]} : vector<8x256xf32> to vector<8x128xf32>
    %cst_7 = arith.constant 5.000000e-01 : f32
    %10 = vector.broadcast %cst_7 : f32 to vector<8x128xf32>
    %11 = arith.mulf %10, %9 : vector<8x128xf32>
    %12 = math.tanh %11 : vector<8x128xf32>
    %cst_8 = arith.constant 1.000000e+00 : f32
    %13 = vector.broadcast %cst_8 : f32 to vector<8x128xf32>
    %14 = arith.addf %12, %13 : vector<8x128xf32>
    %cst_9 = arith.constant 5.000000e-01 : f32
    %15 = vector.broadcast %cst_9 : f32 to vector<8x128xf32>
    %16 = arith.mulf %15, %14 : vector<8x128xf32>
    %17 = vector.extract_strided_slice %8 {offsets = [0, 128], sizes = [8, 128], strides = [1, 1]} : vector<8x256xf32> to vector<8x128xf32>
    %cst_10 = arith.constant 5.000000e-01 : f32
    %18 = vector.broadcast %cst_10 : f32 to vector<8x128xf32>
    %19 = arith.mulf %18, %17 : vector<8x128xf32>
    %20 = math.tanh %19 : vector<8x128xf32>
    %cst_11 = arith.constant 1.000000e+00 : f32
    %21 = vector.broadcast %cst_11 : f32 to vector<8x128xf32>
    %22 = arith.addf %20, %21 : vector<8x128xf32>
    %cst_12 = arith.constant 5.000000e-01 : f32
    %23 = vector.broadcast %cst_12 : f32 to vector<8x128xf32>
    %24 = arith.mulf %23, %22 : vector<8x128xf32>
    %c0_13 = arith.constant 0 : index
    %c0_14 = arith.constant 0 : index
    %25 = vector.load %arg7[%c0_13, %c0_14] : memref<128x128xbf16, #tpu.memory_space<vmem>>, vector<128x128xbf16>
    %cst_15 = arith.constant dense<0.000000e+00> : vector<8x128xf32>
    %26 = tpu.matmul %2, %25, %cst_15 {dimension_numbers = #tpu.dot_dimension_numbers<[1], [0], [0], [1], [0, 0, 1, 1], [], []>} : vector<8x128xbf16>, vector<128x128xbf16>, vector<8x128xf32> -> vector<8x128xf32>
    %c0_16 = arith.constant 0 : index
    %c0_17 = arith.constant 0 : index
    %27 = vector.load %arg8[%c0_16, %c0_17] : memref<1x128xf32, #tpu.memory_space<vmem>>, vector<1x128xf32>
    %28 = vector.broadcast %27 : vector<1x128xf32> to vector<8x128xf32>
    %29 = arith.addf %26, %28 : vector<8x128xf32>
    %c0_18 = arith.constant 0 : index
    %c0_19 = arith.constant 0 : index
    %30 = vector.load %arg5[%c0_18, %c0_19] : memref<128x128xbf16, #tpu.memory_space<vmem>>, vector<128x128xbf16>
    %cst_20 = arith.constant dense<0.000000e+00> : vector<8x128xf32>
    %31 = tpu.matmul %0, %30, %cst_20 {dimension_numbers = #tpu.dot_dimension_numbers<[1], [0], [0], [1], [0, 0, 1, 1], [], []>} : vector<8x128xbf16>, vector<128x128xbf16>, vector<8x128xf32> -> vector<8x128xf32>
    %c0_21 = arith.constant 0 : index
    %c0_22 = arith.constant 0 : index
    %32 = vector.load %arg6[%c0_21, %c0_22] : memref<1x128xf32, #tpu.memory_space<vmem>>, vector<1x128xf32>
    %33 = vector.broadcast %32 : vector<1x128xf32> to vector<8x128xf32>
    %34 = arith.addf %31, %33 : vector<8x128xf32>
    %35 = arith.mulf %16, %29 : vector<8x128xf32>
    %36 = arith.addf %34, %35 : vector<8x128xf32>
    %37 = math.tanh %36 : vector<8x128xf32>
    %38 = arith.subf %1, %37 : vector<8x128xf32>
    %39 = arith.mulf %24, %38 : vector<8x128xf32>
    %40 = arith.addf %37, %39 : vector<8x128xf32>
    %c0_23 = arith.constant 0 : index
    %c0_24 = arith.constant 0 : index
    %41 = vector.load %arg12[%c0_23, %c0_24] : memref<8x128xf32, #tpu.memory_space<vmem>>, vector<8x128xf32>
    tpu.vector_store %arg12[%c0_23, %c0_24], %40 {strides = array<i32>} : memref<8x128xf32, #tpu.memory_space<vmem>>, vector<8x128xf32>,
    %42 = arith.truncf %40 : vector<8x128xf32> to vector<8x128xbf16>
    %c0_25 = arith.constant 0 : index
    %c0_26 = arith.constant 0 : index
    %43 = vector.load %arg9[%c0_25, %c0_26] : memref<128x128xbf16, #tpu.memory_space<vmem>>, vector<128x128xbf16>
    %cst_27 = arith.constant dense<0.000000e+00> : vector<8x128xf32>
    %44 = tpu.matmul %42, %43, %cst_27 {dimension_numbers = #tpu.dot_dimension_numbers<[1], [0], [0], [1], [0, 0, 1, 1], [], []>} : vector<8x128xbf16>, vector<128x128xbf16>, vector<8x128xf32> -> vector<8x128xf32>
    %c0_28 = arith.constant 0 : index
    %c0_29 = arith.constant 0 : index
    %45 = vector.load %arg10[%c0_28, %c0_29] : memref<1x128xf32, #tpu.memory_space<vmem>>, vector<1x128xf32>
    %46 = vector.broadcast %45 : vector<1x128xf32> to vector<8x128xf32>
    %47 = arith.addf %44, %46 : vector<8x128xf32>
    %c0_30 = arith.constant 0 : index
    %c0_31 = arith.constant 0 : index
    %48 = vector.load %arg11[%c0_30, %c0_31] : memref<8x128xf32, #tpu.memory_space<vmem>>, vector<8x128xf32>
    tpu.vector_store %arg11[%c0_30, %c0_31], %47 {strides = array<i32>} : memref<8x128xf32, #tpu.memory_space<vmem>>, vector<8x128xf32>,
    return
  }
  func.func @transform_0(%arg0: i32) -> (i32, i32) {
    %c0_i32 = arith.constant 0 : i32
    %c0_i32_0 = arith.constant 0 : i32
    return %arg0, %c0_i32 : i32, i32
  }
  func.func @transform_1(%arg0: i32) -> (i32, i32) {
    %c0_i32 = arith.constant 0 : i32
    %c0_i32_0 = arith.constant 0 : i32
    return %arg0, %c0_i32 : i32, i32
  }
  func.func @transform_2(%arg0: i32) -> (i32, i32) {
    %c0_i32 = arith.constant 0 : i32
    %c0_i32_0 = arith.constant 0 : i32
    %c0_i32_1 = arith.constant 0 : i32
    return %c0_i32, %c0_i32_0 : i32, i32
  }
  func.func @transform_3(%arg0: i32) -> (i32, i32) {
    %c0_i32 = arith.constant 0 : i32
    %c0_i32_0 = arith.constant 0 : i32
    %c0_i32_1 = arith.constant 0 : i32
    return %c0_i32, %c0_i32_0 : i32, i32
  }
  func.func @transform_4(%arg0: i32) -> (i32, i32) {
    %c0_i32 = arith.constant 0 : i32
    %c0_i32_0 = arith.constant 0 : i32
    %c0_i32_1 = arith.constant 0 : i32
    return %c0_i32, %c0_i32_0 : i32, i32
  }
  func.func @transform_5(%arg0: i32) -> (i32, i32) {
    %c0_i32 = arith.constant 0 : i32
    %c0_i32_0 = arith.constant 0 : i32
    %c0_i32_1 = arith.constant 0 : i32
    return %c0_i32, %c0_i32_0 : i32, i32
  }
  func.func @transform_6(%arg0: i32) -> (i32, i32) {
    %c0_i32 = arith.constant 0 : i32
    %c0_i32_0 = arith.constant 0 : i32
    %c0_i32_1 = arith.constant 0 : i32
    return %c0_i32, %c0_i32_0 : i32, i32
  }
  func.func @transform_7(%arg0: i32) -> (i32, i32) {
    %c0_i32 = arith.constant 0 : i32
    %c0_i32_0 = arith.constant 0 : i32
    %c0_i32_1 = arith.constant 0 : i32
    return %c0_i32, %c0_i32_0 : i32, i32
  }
  func.func @transform_8(%arg0: i32) -> (i32, i32) {
    %c0_i32 = arith.constant 0 : i32
    %c0_i32_0 = arith.constant 0 : i32
    %c0_i32_1 = arith.constant 0 : i32
    return %c0_i32, %c0_i32_0 : i32, i32
  }
  func.func @transform_9(%arg0: i32) -> (i32, i32) {
    %c0_i32 = arith.constant 0 : i32
    %c0_i32_0 = arith.constant 0 : i32
    %c0_i32_1 = arith.constant 0 : i32
    return %c0_i32, %c0_i32_0 : i32, i32
  }
  func.func @transform_10(%arg0: i32) -> (i32, i32) {
    %c0_i32 = arith.constant 0 : i32
    %c0_i32_0 = arith.constant 0 : i32
    return %arg0, %c0_i32 : i32, i32
  }
  func.func @transform_11(%arg0: i32) -> (i32, i32) {
    %c0_i32 = arith.constant 0 : i32
    %c0_i32_0 = arith.constant 0 : i32
    return %arg0, %c0_i32 : i32, i32
  }
}

module attributes {stable_mosaic.version = 11 : i64} {
  func.func @gru_layer_kernel(%arg0: i32, %arg1: memref<8x128xbf16, #tpu.memory_space<vmem>>, %arg2: memref<8x128xf32, #tpu.memory_space<vmem>>, %arg3: memref<256x256xbf16, #tpu.memory_space<vmem>>, %arg4: memref<1x256xf32, #tpu.memory_space<vmem>>, %arg5: memref<128x128xbf16, #tpu.memory_space<vmem>>, %arg6: memref<1x128xf32, #tpu.memory_space<vmem>>, %arg7: memref<128x128xbf16, #tpu.memory_space<vmem>>, %arg8: memref<1x128xf32, #tpu.memory_space<vmem>>, %arg9: memref<128x128xbf16, #tpu.memory_space<vmem>>, %arg10: memref<1x128xf32, #tpu.memory_space<vmem>>, %arg11: memref<8x128xf32, #tpu.memory_space<vmem>>, %arg12: memref<8x128xf32, #tpu.memory_space<vmem>>) attributes {dimension_semantics = [#tpu.dimension_semantics<parallel>], iteration_bounds = array<i64: 1>, scalar_prefetch = 0 : i64, scratch_operands = 0 : i64, tpu.core_type = #tpu.core_type<tc>, window_params = [{transform_indices = @transform_0, window_bounds = array<i64: 8, 128>}, {transform_indices = @transform_1, window_bounds = array<i64: 8, 128>}, {pipeline_mode = #tpu.pipeline_mode<synchronous>, transform_indices = @transform_2, window_bounds = array<i64: 256, 256>}, {pipeline_mode = #tpu.pipeline_mode<synchronous>, transform_indices = @transform_3, window_bounds = array<i64: 1, 256>}, {pipeline_mode = #tpu.pipeline_mode<synchronous>, transform_indices = @transform_4, window_bounds = array<i64: 128, 128>}, {pipeline_mode = #tpu.pipeline_mode<synchronous>, transform_indices = @transform_5, window_bounds = array<i64: 1, 128>}, {pipeline_mode = #tpu.pipeline_mode<synchronous>, transform_indices = @transform_6, window_bounds = array<i64: 128, 128>}, {pipeline_mode = #tpu.pipeline_mode<synchronous>, transform_indices = @transform_7, window_bounds = array<i64: 1, 128>}, {pipeline_mode = #tpu.pipeline_mode<synchronous>, transform_indices = @transform_8, window_bounds = array<i64: 128, 128>}, {pipeline_mode = #tpu.pipeline_mode<synchronous>, transform_indices = @transform_9, window_bounds = array<i64: 1, 128>}, {transform_indices = @transform_10, window_bounds = array<i64: 8, 128>}, {transform_indices = @transform_11, window_bounds = array<i64: 8, 128>}]} {
    %c0 = arith.constant 0 : index
    %c0_0 = arith.constant 0 : index
    %0 = vector.load %arg1[%c0, %c0_0] : memref<8x128xbf16, #tpu.memory_space<vmem>>, vector<8x128xbf16>
    %c0_1 = arith.constant 0 : index
    %c0_2 = arith.constant 0 : index
    %1 = vector.load %arg2[%c0_1, %c0_2] : memref<8x128xf32, #tpu.memory_space<vmem>>, vector<8x128xf32>
    %2 = arith.truncf %1 : vector<8x128xf32> to vector<8x128xbf16>
    %3 = tpu.concatenate %0, %2 in 1 : vector<8x128xbf16>, vector<8x128xbf16> -> vector<8x256xbf16>
    %c0_3 = arith.constant 0 : index
    %c0_4 = arith.constant 0 : index
    %4 = vector.load %arg3[%c0_3, %c0_4] : memref<256x256xbf16, #tpu.memory_space<vmem>>, vector<256x256xbf16>
    %cst = arith.constant dense<0.000000e+00> : vector<8x256xf32>
    %5 = tpu.matmul %3, %4, %cst {dimension_numbers = #tpu.dot_dimension_numbers<[1], [0], [0], [1], [0, 0, 1, 1], [], []>} : vector<8x256xbf16>, vector<256x256xbf16>, vector<8x256xf32> -> vector<8x256xf32>
    %c0_5 = arith.constant 0 : index
    %c0_6 = arith.constant 0 : index
    %6 = vector.load %arg4[%c0_5, %c0_6] : memref<1x256xf32, #tpu.memory_space<vmem>>, vector<1x256xf32>
    %7 = vector.broadcast %6 : vector<1x256xf32> to vector<8x256xf32>
    %8 = arith.addf %5, %7 : vector<8x256xf32>
    %9 = vector.extract_strided_slice %8 {offsets = [0, 0], sizes = [8, 128], strides = [1, 1]} : vector<8x256xf32> to vector<8x128xf32>
    %cst_7 = arith.constant 5.000000e-01 : f32
    %10 = vector.broadcast %cst_7 : f32 to vector<8x128xf32>
    %11 = arith.mulf %10, %9 : vector<8x128xf32>
    %12 = math.tanh %11 : vector<8x128xf32>
    %cst_8 = arith.constant 1.000000e+00 : f32
    %13 = vector.broadcast %cst_8 : f32 to vector<8x128xf32>
    %14 = arith.addf %12, %13 : vector<8x128xf32>
    %cst_9 = arith.constant 5.000000e-01 : f32
    %15 = vector.broadcast %cst_9 : f32 to vector<8x128xf32>
    %16 = arith.mulf %15, %14 : vector<8x128xf32>
    %17 = vector.extract_strided_slice %8 {offsets = [0, 128], sizes = [8, 128], strides = [1, 1]} : vector<8x256xf32> to vector<8x128xf32>
    %cst_10 = arith.constant 5.000000e-01 : f32
    %18 = vector.broadcast %cst_10 : f32 to vector<8x128xf32>
    %19 = arith.mulf %18, %17 : vector<8x128xf32>
    %20 = math.tanh %19 : vector<8x128xf32>
    %cst_11 = arith.constant 1.000000e+00 : f32
    %21 = vector.broadcast %cst_11 : f32 to vector<8x128xf32>
    %22 = arith.addf %20, %21 : vector<8x128xf32>
    %cst_12 = arith.constant 5.000000e-01 : f32
    %23 = vector.broadcast %cst_12 : f32 to vector<8x128xf32>
    %24 = arith.mulf %23, %22 : vector<8x128xf32>
    %c0_13 = arith.constant 0 : index
    %c0_14 = arith.constant 0 : index
    %25 = vector.load %arg7[%c0_13, %c0_14] : memref<128x128xbf16, #tpu.memory_space<vmem>>, vector<128x128xbf16>
    %cst_15 = arith.constant dense<0.000000e+00> : vector<8x128xf32>
    %26 = tpu.matmul %2, %25, %cst_15 {dimension_numbers = #tpu.dot_dimension_numbers<[1], [0], [0], [1], [0, 0, 1, 1], [], []>} : vector<8x128xbf16>, vector<128x128xbf16>, vector<8x128xf32> -> vector<8x128xf32>
    %c0_16 = arith.constant 0 : index
    %c0_17 = arith.constant 0 : index
    %27 = vector.load %arg8[%c0_16, %c0_17] : memref<1x128xf32, #tpu.memory_space<vmem>>, vector<1x128xf32>
    %28 = vector.broadcast %27 : vector<1x128xf32> to vector<8x128xf32>
    %29 = arith.addf %26, %28 : vector<8x128xf32>
    %c0_18 = arith.constant 0 : index
    %c0_19 = arith.constant 0 : index
    %30 = vector.load %arg5[%c0_18, %c0_19] : memref<128x128xbf16, #tpu.memory_space<vmem>>, vector<128x128xbf16>
    %cst_20 = arith.constant dense<0.000000e+00> : vector<8x128xf32>
    %31 = tpu.matmul %0, %30, %cst_20 {dimension_numbers = #tpu.dot_dimension_numbers<[1], [0], [0], [1], [0, 0, 1, 1], [], []>} : vector<8x128xbf16>, vector<128x128xbf16>, vector<8x128xf32> -> vector<8x128xf32>
    %c0_21 = arith.constant 0 : index
    %c0_22 = arith.constant 0 : index
    %32 = vector.load %arg6[%c0_21, %c0_22] : memref<1x128xf32, #tpu.memory_space<vmem>>, vector<1x128xf32>
    %33 = vector.broadcast %32 : vector<1x128xf32> to vector<8x128xf32>
    %34 = arith.addf %31, %33 : vector<8x128xf32>
    %35 = arith.mulf %16, %29 : vector<8x128xf32>
    %36 = arith.addf %34, %35 : vector<8x128xf32>
    %37 = math.tanh %36 : vector<8x128xf32>
    %38 = arith.subf %1, %37 : vector<8x128xf32>
    %39 = arith.mulf %24, %38 : vector<8x128xf32>
    %40 = arith.addf %37, %39 : vector<8x128xf32>
    %c0_23 = arith.constant 0 : index
    %c0_24 = arith.constant 0 : index
    %41 = vector.load %arg12[%c0_23, %c0_24] : memref<8x128xf32, #tpu.memory_space<vmem>>, vector<8x128xf32>
    tpu.vector_store %arg12[%c0_23, %c0_24], %40 {strides = array<i32>} : memref<8x128xf32, #tpu.memory_space<vmem>>, vector<8x128xf32>,
    %42 = arith.truncf %40 : vector<8x128xf32> to vector<8x128xbf16>
    %c0_25 = arith.constant 0 : index
    %c0_26 = arith.constant 0 : index
    %43 = vector.load %arg9[%c0_25, %c0_26] : memref<128x128xbf16, #tpu.memory_space<vmem>>, vector<128x128xbf16>
    %cst_27 = arith.constant dense<0.000000e+00> : vector<8x128xf32>
    %44 = tpu.matmul %42, %43, %cst_27 {dimension_numbers = #tpu.dot_dimension_numbers<[1], [0], [0], [1], [0, 0, 1, 1], [], []>} : vector<8x128xbf16>, vector<128x128xbf16>, vector<8x128xf32> -> vector<8x128xf32>
    %c0_28 = arith.constant 0 : index
    %c0_29 = arith.constant 0 : index
    %45 = vector.load %arg10[%c0_28, %c0_29] : memref<1x128xf32, #tpu.memory_space<vmem>>, vector<1x128xf32>
    %46 = vector.broadcast %45 : vector<1x128xf32> to vector<8x128xf32>
    %47 = arith.addf %44, %46 : vector<8x128xf32>
    %c0_30 = arith.constant 0 : index
    %c0_31 = arith.constant 0 : index
    %48 = vector.load %arg11[%c0_30, %c0_31] : memref<8x128xf32, #tpu.memory_space<vmem>>, vector<8x128xf32>
    tpu.vector_store %arg11[%c0_30, %c0_31], %47 {strides = array<i32>} : memref<8x128xf32, #tpu.memory_space<vmem>>, vector<8x128xf32>,
    return
  }
  func.func @transform_0(%arg0: i32) -> (i32, i32) {
    %c0_i32 = arith.constant 0 : i32
    %c0_i32_0 = arith.constant 0 : i32
    return %arg0, %c0_i32 : i32, i32
  }
  func.func @transform_1(%arg0: i32) -> (i32, i32) {
    %c0_i32 = arith.constant 0 : i32
    %c0_i32_0 = arith.constant 0 : i32
    return %arg0, %c0_i32 : i32, i32
  }
  func.func @transform_2(%arg0: i32) -> (i32, i32) {
    %c0_i32 = arith.constant 0 : i32
    %c0_i32_0 = arith.constant 0 : i32
    %c0_i32_1 = arith.constant 0 : i32
    return %c0_i32, %c0_i32_0 : i32, i32
  }
  func.func @transform_3(%arg0: i32) -> (i32, i32) {
    %c0_i32 = arith.constant 0 : i32
    %c0_i32_0 = arith.constant 0 : i32
    %c0_i32_1 = arith.constant 0 : i32
    return %c0_i32, %c0_i32_0 : i32, i32
  }
  func.func @transform_4(%arg0: i32) -> (i32, i32) {
    %c0_i32 = arith.constant 0 : i32
    %c0_i32_0 = arith.constant 0 : i32
    %c0_i32_1 = arith.constant 0 : i32
    return %c0_i32, %c0_i32_0 : i32, i32
  }
  func.func @transform_5(%arg0: i32) -> (i32, i32) {
    %c0_i32 = arith.constant 0 : i32
    %c0_i32_0 = arith.constant 0 : i32
    %c0_i32_1 = arith.constant 0 : i32
    return %c0_i32, %c0_i32_0 : i32, i32
  }
  func.func @transform_6(%arg0: i32) -> (i32, i32) {
    %c0_i32 = arith.constant 0 : i32
    %c0_i32_0 = arith.constant 0 : i32
    %c0_i32_1 = arith.constant 0 : i32
    return %c0_i32, %c0_i32_0 : i32, i32
  }
  func.func @transform_7(%arg0: i32) -> (i32, i32) {
    %c0_i32 = arith.constant 0 : i32
    %c0_i32_0 = arith.constant 0 : i32
    %c0_i32_1 = arith.constant 0 : i32
    return %c0_i32, %c0_i32_0 : i32, i32
  }
  func.func @transform_8(%arg0: i32) -> (i32, i32) {
    %c0_i32 = arith.constant 0 : i32
    %c0_i32_0 = arith.constant 0 : i32
    %c0_i32_1 = arith.constant 0 : i32
    return %c0_i32, %c0_i32_0 : i32, i32
  }
  func.func @transform_9(%arg0: i32) -> (i32, i32) {
    %c0_i32 = arith.constant 0 : i32
    %c0_i32_0 = arith.constant 0 : i32
    %c0_i32_1 = arith.constant 0 : i32
    return %c0_i32, %c0_i32_0 : i32, i32
  }
  func.func @transform_10(%arg0: i32) -> (i32, i32) {
    %c0_i32 = arith.constant 0 : i32
    %c0_i32_0 = arith.constant 0 : i32
    return %arg0, %c0_i32 : i32, i32
  }
  func.func @transform_11(%arg0: i32) -> (i32, i32) {
    %c0_i32 = arith.constant 0 : i32
    %c0_i32_0 = arith.constant 0 : i32
    return %arg0, %c0_i32 : i32, i32
  }
}

</mosaic_0001>

<llo_original>
// kernel: tpu_custom_call.1
$region0: #{tpu_custom_call.1}
  #allocation0 [shape = 'u32[]', space=smem, size = 0x4, offset = 0x4, fixed_abs, tag = 'smem constant byte address 0x4 - core index']
  #allocation1 [shape = 'u32[144,128]{1,0:T(1,128)}', space=vmem, size = 0x12000, scoped, tag = 'internal scratch']
  %s0 = inlined_call_operand.hbm [shape: bf16[8,128], index: 0, kind: input, shape index: {}]
  %s1 = inlined_call_operand.hbm [shape: f32[8,128], index: 1, kind: input, shape index: {}]
  %s2 = inlined_call_operand.hbm [shape: bf16[256,256], index: 2, kind: input, shape index: {}]
  %s3 = inlined_call_operand.vmem [shape: f32[1,256], index: 3, kind: input, shape index: {}]
  %s4 = inlined_call_operand.hbm [shape: bf16[128,128], index: 4, kind: input, shape index: {}]
  %s5 = inlined_call_operand.vmem [shape: f32[1,128], index: 5, kind: input, shape index: {}]
  %s6 = inlined_call_operand.hbm [shape: bf16[128,128], index: 6, kind: input, shape index: {}]
  %s7 = inlined_call_operand.vmem [shape: f32[1,128], index: 7, kind: input, shape index: {}]
  %s8 = inlined_call_operand.hbm [shape: bf16[128,128], index: 8, kind: input, shape index: {}]
  %s9 = inlined_call_operand.vmem [shape: f32[1,128], index: 9, kind: input, shape index: {}]
  %s10 = inlined_call_operand.hbm [shape: f32[8,128], index: 10, kind: output, shape index: {0}]
  %s11 = inlined_call_operand.hbm [shape: f32[8,128], index: 11, kind: output, shape index: {1}]
  %12 = xla_tuple %s10, %s11
  %s13 = sld [smem:[#allocation0]]
  $region82: #{tpu_custom_call.1} parent=0
    _
  %s15 = ssub.s32 1, %s13
  %s16 = scalar_select 0, %s15, %s13
  $region1: #{tpu_custom_call.1} parent=0
    #allocation2 [shape = 'u8[2048]{0}', space=vmem, size = 0x800, scoped, tag = 'input window, operand 0, single buffered']
    #allocation3 [shape = 's32[1]{0}', space=sflag, size = 0x4, scoped, tag = 'scoped memory for tpu_custom_call.1']
    #allocation4 [shape = 's32[1]{0}', space=sflag, size = 0x4, scoped, tag = 'scoped memory for tpu_custom_call.1']
    #allocation5 [shape = 'u8[4096]{0}', space=vmem, size = 0x1000, scoped, tag = 'input window, operand 1, single buffered']
    #allocation6 [shape = 's32[1]{0}', space=sflag, size = 0x4, scoped, tag = 'scoped memory for tpu_custom_call.1']
    #allocation7 [shape = 'u8[131072]{0}', space=vmem, size = 0x20000, scoped, tag = 'input window, operand 2, single buffered']
    #allocation8 [shape = 'u8[32768]{0}', space=vmem, size = 0x8000, scoped, tag = 'input window, operand 4, single buffered']
    #allocation9 [shape = 's32[1]{0}', space=sflag, size = 0x4, scoped, tag = 'scoped memory for tpu_custom_call.1']
    #allocation10 [shape = 'u8[32768]{0}', space=vmem, size = 0x8000, scoped, tag = 'input window, operand 6, single buffered']
    #allocation11 [shape = 'u8[32768]{0}', space=vmem, size = 0x8000, scoped, tag = 'input window, operand 8, single buffered']
    #allocation12 [shape = 's32[1]{0}', space=sflag, size = 0x4, scoped, tag = 'scoped memory for tpu_custom_call.1']
    #allocation13 [shape = 'u8[4096]{0}', space=vmem, size = 0x1000, scoped, tag = 'output window, operand 0, single buffered']
    #allocation14 [shape = 'u8[4096]{0}', space=vmem, size = 0x1000, scoped, tag = 'output window, operand 1, single buffered']
    #allocation15 [shape = 's32[1]{0}', space=sflag, size = 0x4, scoped, tag = 'scoped memory for tpu_custom_call.1']
    %17 = vsyncpa [#allocation3], 0
    %18 = vsyncpa [#allocation6], 0
    %19 = vsyncpa [#allocation9], 0
    %20 = vsyncpa [#allocation12], 0
    %21 = vsyncpa [#allocation4], 0
    %22 = vsyncpa [#allocation15], 0
    // Predicated region
    $region2: #{tpu_custom_call.1} parent=1 // pred_check
      _
    $region3: #{tpu_custom_call.1} parent=1 // pred_check_branch
      %24 = sbr.rel (0) target = $region5
    $region4: #{tpu_custom_call.1} parent=1 // pred_region
      %s26 = ssub.s32 64, 64
      %27 = vsyncadd [#allocation3], %s26
      %s29 = sshll.u32 [#allocation2], 4
      %s30 = int_to_ptr.vmem [resolvable:$true] %s29
      %32 = dma.hbm_to_vmem [thread:$0]  %s0, 64, %s30, [#allocation3]
    $region5: #{tpu_custom_call.1} parent=1 // pred_fallthru
      _
    // Predicated region
    $region6: #{tpu_custom_call.1} parent=1 // pred_check
      _
    $region7: #{tpu_custom_call.1} parent=1 // pred_check_branch
      %34 = sbr.rel (0) target = $region9
    $region8: #{tpu_custom_call.1} parent=1 // pred_region
      %s36 = ssub.s32 128, 128
      %37 = vsyncadd [#allocation6], %s36
      %s39 = sshll.u32 [#allocation5], 4
      %s40 = int_to_ptr.vmem [resolvable:$true] %s39
      %42 = dma.hbm_to_vmem [thread:$0]  %s1, 128, %s40, [#allocation6]
    $region9: #{tpu_custom_call.1} parent=1 // pred_fallthru
      _
    // Predicated region
    $region10: #{tpu_custom_call.1} parent=1 // pred_check
      _
    $region11: #{tpu_custom_call.1} parent=1 // pred_check_branch
      %44 = sbr.rel (0) target = $region13
    $region12: #{tpu_custom_call.1} parent=1 // pred_region
      %s46 = ssub.s32 4096, 4096
      %47 = vsyncadd [#allocation6], %s46
      %s48 = sshll.u32 [#allocation7], 4
      %s49 = int_to_ptr.vmem [resolvable:$true] %s48
      %54 = dma.hbm_to_vmem [thread:$0]  %s2, 4096, %s49, [#allocation6], 128, 128, 8
    $region13: #{tpu_custom_call.1} parent=1 // pred_fallthru
      _
    // Predicated region
    $region14: #{tpu_custom_call.1} parent=1 // pred_check
      _
    $region15: #{tpu_custom_call.1} parent=1 // pred_check_branch
      %56 = sbr.rel (0) target = $region17
    $region16: #{tpu_custom_call.1} parent=1 // pred_region
      _
    $region17: #{tpu_custom_call.1} parent=1 // pred_fallthru
      _
    // Predicated region
    $region18: #{tpu_custom_call.1} parent=1 // pred_check
      _
    $region19: #{tpu_custom_call.1} parent=1 // pred_check_branch
      %58 = sbr.rel (0) target = $region21
    $region20: #{tpu_custom_call.1} parent=1 // pred_region
      %s60 = ssub.s32 1024, 1024
      %61 = vsyncadd [#allocation9], %s60
      %s62 = sshll.u32 [#allocation8], 4
      %s63 = int_to_ptr.vmem [resolvable:$true] %s62
      %68 = dma.hbm_to_vmem [thread:$0]  %s4, 1024, %s63, [#allocation9], 64, 64, 4
    $region21: #{tpu_custom_call.1} parent=1 // pred_fallthru
      _
    // Predicated region
    $region22: #{tpu_custom_call.1} parent=1 // pred_check
      _
    $region23: #{tpu_custom_call.1} parent=1 // pred_check_branch
      %70 = sbr.rel (0) target = $region25
    $region24: #{tpu_custom_call.1} parent=1 // pred_region
      _
    $region25: #{tpu_custom_call.1} parent=1 // pred_fallthru
      _
    // Predicated region
    $region26: #{tpu_custom_call.1} parent=1 // pred_check
      _
    $region27: #{tpu_custom_call.1} parent=1 // pred_check_branch
      %72 = sbr.rel (0) target = $region29
    $region28: #{tpu_custom_call.1} parent=1 // pred_region
      %s74 = ssub.s32 1024, 1024
      %75 = vsyncadd [#allocation9], %s74
      %s76 = sshll.u32 [#allocation10], 4
      %s77 = int_to_ptr.vmem [resolvable:$true] %s76
      %82 = dma.hbm_to_vmem [thread:$0]  %s6, 1024, %s77, [#allocation9], 64, 64, 4
    $region29: #{tpu_custom_call.1} parent=1 // pred_fallthru
      _
    // Predicated region
    $region30: #{tpu_custom_call.1} parent=1 // pred_check
      _
    $region31: #{tpu_custom_call.1} parent=1 // pred_check_branch
      %84 = sbr.rel (0) target = $region33
    $region32: #{tpu_custom_call.1} parent=1 // pred_region
      _
    $region33: #{tpu_custom_call.1} parent=1 // pred_fallthru
      _
    // Predicated region
    $region34: #{tpu_custom_call.1} parent=1 // pred_check
      _
    $region35: #{tpu_custom_call.1} parent=1 // pred_check_branch
      %86 = sbr.rel (0) target = $region37
    $region36: #{tpu_custom_call.1} parent=1 // pred_region
      %s88 = ssub.s32 1024, 1024
      %89 = vsyncadd [#allocation12], %s88
      %s90 = sshll.u32 [#allocation11], 4
      %s91 = int_to_ptr.vmem [resolvable:$true] %s90
      %96 = dma.hbm_to_vmem [thread:$0]  %s8, 1024, %s91, [#allocation12], 64, 64, 4
    $region37: #{tpu_custom_call.1} parent=1 // pred_fallthru
      _
    // Predicated region
    $region38: #{tpu_custom_call.1} parent=1 // pred_check
      _
    $region39: #{tpu_custom_call.1} parent=1 // pred_check_branch
      %98 = sbr.rel (0) target = $region41
    $region40: #{tpu_custom_call.1} parent=1 // pred_region
      _
    $region41: #{tpu_custom_call.1} parent=1 // pred_fallthru
      _
    // Predicated region
    $region42: #{tpu_custom_call.1} parent=1 // pred_check
      _
    $region43: #{tpu_custom_call.1} parent=1 // pred_check_branch
      %100 = sbr.rel (0) target = $region45
    $region44: #{tpu_custom_call.1} parent=1 // pred_region
      %101 = dma.done [#allocation3], 64
    $region45: #{tpu_custom_call.1} parent=1 // pred_fallthru
      _
    // Predicated region
    $region46: #{tpu_custom_call.1} parent=1 // pred_check
      _
    $region47: #{tpu_custom_call.1} parent=1 // pred_check_branch
      %103 = sbr.rel (0) target = $region49
    $region48: #{tpu_custom_call.1} parent=1 // pred_region
      %104 = dma.done [#allocation6], 128
    $region49: #{tpu_custom_call.1} parent=1 // pred_fallthru
      _
    // Predicated region
    $region50: #{tpu_custom_call.1} parent=1 // pred_check
      _
    $region51: #{tpu_custom_call.1} parent=1 // pred_check_branch
      %106 = sbr.rel (0) target = $region53
    $region52: #{tpu_custom_call.1} parent=1 // pred_region
      %107 = dma.done [#allocation6], 4096
    $region53: #{tpu_custom_call.1} parent=1 // pred_fallthru
      _
    // Predicated region
    $region54: #{tpu_custom_call.1} parent=1 // pred_check
      _
    $region55: #{tpu_custom_call.1} parent=1 // pred_check_branch
      %109 = sbr.rel (0) target = $region57
    $region56: #{tpu_custom_call.1} parent=1 // pred_region
      %110 = dma.done [#allocation9], 1024
    $region57: #{tpu_custom_call.1} parent=1 // pred_fallthru
      _
    // Predicated region
    $region58: #{tpu_custom_call.1} parent=1 // pred_check
      _
    $region59: #{tpu_custom_call.1} parent=1 // pred_check_branch
      %112 = sbr.rel (0) target = $region61
    $region60: #{tpu_custom_call.1} parent=1 // pred_region
      %113 = dma.done [#allocation9], 1024
    $region61: #{tpu_custom_call.1} parent=1 // pred_fallthru
      _
    // Predicated region
    $region62: #{tpu_custom_call.1} parent=1 // pred_check
      _
    $region63: #{tpu_custom_call.1} parent=1 // pred_check_branch
      %115 = sbr.rel (0) target = $region65
    $region64: #{tpu_custom_call.1} parent=1 // pred_region
      %116 = dma.done [#allocation12], 1024
    $region65: #{tpu_custom_call.1} parent=1 // pred_fallthru
      _
    %v118 = vld [vmem:[#allocation2] sm:$0xf]
    %v119 = vld [vmem:[#allocation5] sm:$0xff]
    %v120 = vpack.c.bf16 %v119, %v119
    %v121 = vld [vmem:[#allocation7] sm:$0xff]
    %v122 = vld [vmem:[#allocation7 + $0x8] sm:$0xff]
    %v123 = vld [vmem:[#allocation7 + $0x10] sm:$0xff]
    %v124 = vld [vmem:[#allocation7 + $0x18] sm:$0xff]
    %v125 = vld [vmem:[#allocation7 + $0x20] sm:$0xff]
    %v126 = vld [vmem:[#allocation7 + $0x28] sm:$0xff]
    %v127 = vld [vmem:[#allocation7 + $0x30] sm:$0xff]
    %v128 = vld [vmem:[#allocation7 + $0x38] sm:$0xff]
    %v129 = vld [vmem:[#allocation7 + $0x40] sm:$0xff]
    %v130 = vld [vmem:[#allocation7 + $0x48] sm:$0xff]
    %v131 = vld [vmem:[#allocation7 + $0x50] sm:$0xff]
    %v132 = vld [vmem:[#allocation7 + $0x58] sm:$0xff]
    %v133 = vld [vmem:[#allocation7 + $0x60] sm:$0xff]
    %v134 = vld [vmem:[#allocation7 + $0x68] sm:$0xff]
    %v135 = vld [vmem:[#allocation7 + $0x70] sm:$0xff]
    %v136 = vld [vmem:[#allocation7 + $0x78] sm:$0xff]
    %v137 = vld [vmem:[#allocation7 + $0x80] sm:$0xff]
    %v138 = vld [vmem:[#allocation7 + $0x88] sm:$0xff]
    %v139 = vld [vmem:[#allocation7 + $0x90] sm:$0xff]
    %v140 = vld [vmem:[#allocation7 + $0x98] sm:$0xff]
    %v141 = vld [vmem:[#allocation7 + $0xa0] sm:$0xff]
    %v142 = vld [vmem:[#allocation7 + $0xa8] sm:$0xff]
    %v143 = vld [vmem:[#allocation7 + $0xb0] sm:$0xff]
    %v144 = vld [vmem:[#allocation7 + $0xb8] sm:$0xff]
    %v145 = vld [vmem:[#allocation7 + $0xc0] sm:$0xff]
    %v146 = vld [vmem:[#allocation7 + $0xc8] sm:$0xff]
    %v147 = vld [vmem:[#allocation7 + $0xd0] sm:$0xff]
    %v148 = vld [vmem:[#allocation7 + $0xd8] sm:$0xff]
    %v149 = vld [vmem:[#allocation7 + $0xe0] sm:$0xff]
    %v150 = vld [vmem:[#allocation7 + $0xe8] sm:$0xff]
    %v151 = vld [vmem:[#allocation7 + $0xf0] sm:$0xff]
    %v152 = vld [vmem:[#allocation7 + $0xf8] sm:$0xff]
    %v153 = vld [vmem:[%s3] sm:$0x3]
    %v155 = vlaneseq
    %v156 = vshrl.u32 %v155, 7
    %v157 = vsub.s32 0, %v156
    %v158 = vrot.slane %v153, %v157
    %v159 = vlaneseq
    %v160 = vshrl.u32 %v159, 7
    %v161 = vsub.s32 1, %v160
    %v162 = vrot.slane %v153, %v161
    %v197 = vunpack.c.l.b16 %v121
    %v198 = vunpack.c.h.b16 %v121
    %v199 = vunpack.c.l.b16 %v122
    %v200 = vunpack.c.h.b16 %v122
    %v201 = vunpack.c.l.b16 %v123
    %v202 = vunpack.c.h.b16 %v123
    %v203 = vunpack.c.l.b16 %v124
    %v204 = vunpack.c.h.b16 %v124
    %v205 = vunpack.c.l.b16 %v125
    %v206 = vunpack.c.h.b16 %v125
    %v207 = vunpack.c.l.b16 %v126
    %v208 = vunpack.c.h.b16 %v126
    %v209 = vunpack.c.l.b16 %v127
    %v210 = vunpack.c.h.b16 %v127
    %v211 = vunpack.c.l.b16 %v128
    %v212 = vunpack.c.h.b16 %v128
    %v213 = vunpack.c.l.b16 %v129
    %v214 = vunpack.c.h.b16 %v129
    %v215 = vunpack.c.l.b16 %v130
    %v216 = vunpack.c.h.b16 %v130
    %v217 = vunpack.c.l.b16 %v131
    %v218 = vunpack.c.h.b16 %v131
    %v219 = vunpack.c.l.b16 %v132
    %v220 = vunpack.c.h.b16 %v132
    %v221 = vunpack.c.l.b16 %v133
    %v222 = vunpack.c.h.b16 %v133
    %v223 = vunpack.c.l.b16 %v134
    %v224 = vunpack.c.h.b16 %v134
    %v225 = vunpack.c.l.b16 %v135
    %v226 = vunpack.c.h.b16 %v135
    %v227 = vunpack.c.l.b16 %v136
    %v228 = vunpack.c.h.b16 %v136
    %v229 = vunpack.c.l.b16 %v137
    %v230 = vunpack.c.h.b16 %v137
    %v231 = vunpack.c.l.b16 %v138
    %v232 = vunpack.c.h.b16 %v138
    %v233 = vunpack.c.l.b16 %v139
    %v234 = vunpack.c.h.b16 %v139
    %v235 = vunpack.c.l.b16 %v140
    %v236 = vunpack.c.h.b16 %v140
    %v237 = vunpack.c.l.b16 %v141
    %v238 = vunpack.c.h.b16 %v141
    %v239 = vunpack.c.l.b16 %v142
    %v240 = vunpack.c.h.b16 %v142
    %v241 = vunpack.c.l.b16 %v143
    %v242 = vunpack.c.h.b16 %v143
    %v243 = vunpack.c.l.b16 %v144
    %v244 = vunpack.c.h.b16 %v144
    %v245 = vunpack.c.l.b16 %v145
    %v246 = vunpack.c.h.b16 %v145
    %v247 = vunpack.c.l.b16 %v146
    %v248 = vunpack.c.h.b16 %v146
    %v249 = vunpack.c.l.b16 %v147
    %v250 = vunpack.c.h.b16 %v147
    %v251 = vunpack.c.l.b16 %v148
    %v252 = vunpack.c.h.b16 %v148
    %v253 = vunpack.c.l.b16 %v149
    %v254 = vunpack.c.h.b16 %v149
    %v255 = vunpack.c.l.b16 %v150
    %v256 = vunpack.c.h.b16 %v150
    %v257 = vunpack.c.l.b16 %v151
    %v258 = vunpack.c.h.b16 %v151
    %v259 = vunpack.c.l.b16 %v152
    %v260 = vunpack.c.h.b16 %v152
    %v261 = vpack.c.b16 %v199, %v197
    %v262 = vpack.c.b16 %v200, %v198
    %v263 = vpack.c.b16 %v203, %v201
    %v264 = vpack.c.b16 %v204, %v202
    %v265 = vpack.c.b16 %v207, %v205
    %v266 = vpack.c.b16 %v208, %v206
    %v267 = vpack.c.b16 %v211, %v209
    %v268 = vpack.c.b16 %v212, %v210
    %v269 = vpack.c.b16 %v215, %v213
    %v270 = vpack.c.b16 %v216, %v214
    %v271 = vpack.c.b16 %v219, %v217
    %v272 = vpack.c.b16 %v220, %v218
    %v273 = vpack.c.b16 %v223, %v221
    %v274 = vpack.c.b16 %v224, %v222
    %v275 = vpack.c.b16 %v227, %v225
    %v276 = vpack.c.b16 %v228, %v226
    %v277 = vpack.c.b16 %v231, %v229
    %v278 = vpack.c.b16 %v232, %v230
    %v279 = vpack.c.b16 %v235, %v233
    %v280 = vpack.c.b16 %v236, %v234
    %v281 = vpack.c.b16 %v239, %v237
    %v282 = vpack.c.b16 %v240, %v238
    %v283 = vpack.c.b16 %v243, %v241
    %v284 = vpack.c.b16 %v244, %v242
    %v285 = vpack.c.b16 %v247, %v245
    %v286 = vpack.c.b16 %v248, %v246
    %v287 = vpack.c.b16 %v251, %v249
    %v288 = vpack.c.b16 %v252, %v250
    %v289 = vpack.c.b16 %v255, %v253
    %v290 = vpack.c.b16 %v256, %v254
    %v291 = vpack.c.b16 %v259, %v257
    %v292 = vpack.c.b16 %v260, %v258
    %325 = vmatprep.subr.bf16.mxu0 %v262
    %326 = vmatpush1.bf16.msra.mxu0 %v261
    %327 = vmatprep.subr.bf16.mxu0 %v264
    %328 = vmatpush1.bf16.msra.mxu0 %v263
    %329 = vmatprep.subr.bf16.mxu0 %v266
    %330 = vmatpush1.bf16.msra.mxu0 %v265
    %331 = vmatprep.subr.bf16.mxu0 %v268
    %332 = vmatpush1.bf16.msra.mxu0 %v267
    %333 = vmatprep.subr.bf16.mxu0 %v270
    %334 = vmatpush1.bf16.msra.mxu0 %v269
    %335 = vmatprep.subr.bf16.mxu0 %v272
    %336 = vmatpush1.bf16.msra.mxu0 %v271
    %337 = vmatprep.subr.bf16.mxu0 %v274
    %338 = vmatpush1.bf16.msra.mxu0 %v273
    %339 = vmatprep.subr.bf16.mxu0 %v276
    %340 = vmatpush1.bf16.msra.mxu0 %v275
    %341 = vmatprep.subr.bf16.mxu0 %v278
    %342 = vmatpush1.bf16.msra.mxu0 %v277
    %343 = vmatprep.subr.bf16.mxu0 %v280
    %344 = vmatpush1.bf16.msra.mxu0 %v279
    %345 = vmatprep.subr.bf16.mxu0 %v282
    %346 = vmatpush1.bf16.msra.mxu0 %v281
    %347 = vmatprep.subr.bf16.mxu0 %v284
    %348 = vmatpush1.bf16.msra.mxu0 %v283
    %349 = vmatprep.subr.bf16.mxu0 %v286
    %350 = vmatpush1.bf16.msra.mxu0 %v285
    %351 = vmatprep.subr.bf16.mxu0 %v288
    %352 = vmatpush1.bf16.msra.mxu0 %v287
    %353 = vmatprep.subr.bf16.mxu0 %v290
    %354 = vmatpush1.bf16.msra.mxu0 %v289
    %355 = vmatprep.subr.bf16.mxu0 %v292
    %356 = vmatpush1.bf16.msra.mxu0 %v291
    %357 = vmatprep.mubr.bf16.mxu0 %v120
    %358 = vmatmul.mubr.bf16.gmra.mrb[0].mxu0 %v118
    %v359 = vpop.f32.mrb[0].mxu0
    %v360 = vadd.f32 %v158, %v359
    %v361 = vpop.f32.mrb[0].mxu0
    %v362 = vadd.f32 %v162, %v361
    %v363 = vpop.f32.mrb[0].mxu0
    %v364 = vpop.f32.mrb[0].mxu0
    %365 = vdwg.mxu0
    %v366 = vmul.f32 %v360, 0.5
    %v367 = vtanh.pop %v366
    %v368 = vadd.f32 %v367, 1.0
    %v369 = vmul.f32 %v368, 0.5
    %v370 = vmul.f32 %v362, 0.5
    %v371 = vtanh.pop %v370
    %v372 = vadd.f32 %v371, 1.0
    %v373 = vmul.f32 %v372, 0.5
    %v374 = vld [vmem:[#allocation10] sm:$0xf]
    %v375 = vld [vmem:[#allocation10 + $0x4] sm:$0xf]
    %v376 = vld [vmem:[#allocation10 + $0x8] sm:$0xf]
    %v377 = vld [vmem:[#allocation10 + $0xc] sm:$0xf]
    %v378 = vld [vmem:[#allocation10 + $0x10] sm:$0xf]
    %v379 = vld [vmem:[#allocation10 + $0x14] sm:$0xf]
    %v380 = vld [vmem:[#allocation10 + $0x18] sm:$0xf]
    %v381 = vld [vmem:[#allocation10 + $0x1c] sm:$0xf]
    %v382 = vld [vmem:[#allocation10 + $0x20] sm:$0xf]
    %v383 = vld [vmem:[#allocation10 + $0x24] sm:$0xf]
    %v384 = vld [vmem:[#allocation10 + $0x28] sm:$0xf]
    %v385 = vld [vmem:[#allocation10 + $0x2c] sm:$0xf]
    %v386 = vld [vmem:[#allocation10 + $0x30] sm:$0xf]
    %v387 = vld [vmem:[#allocation10 + $0x34] sm:$0xf]
    %v388 = vld [vmem:[#allocation10 + $0x38] sm:$0xf]
    %v389 = vld [vmem:[#allocation10 + $0x3c] sm:$0xf]
    %v390 = vld [vmem:[%s7] sm:$0x1]
    %v392 = vlaneseq
    %v393 = vshrl.u32 %v392, 7
    %v394 = vsub.s32 0, %v393
    %v395 = vrot.slane %v390, %v394
    %v413 = vunpack.c.l.b16 %v374
    %v414 = vunpack.c.l.b16 %v375
    %v415 = vunpack.c.l.b16 %v376
    %v416 = vunpack.c.l.b16 %v377
    %v417 = vunpack.c.l.b16 %v378
    %v418 = vunpack.c.l.b16 %v379
    %v419 = vunpack.c.l.b16 %v380
    %v420 = vunpack.c.l.b16 %v381
    %v421 = vunpack.c.l.b16 %v382
    %v422 = vunpack.c.l.b16 %v383
    %v423 = vunpack.c.l.b16 %v384
    %v424 = vunpack.c.l.b16 %v385
    %v425 = vunpack.c.l.b16 %v386
    %v426 = vunpack.c.l.b16 %v387
    %v427 = vunpack.c.l.b16 %v388
    %v428 = vunpack.c.l.b16 %v389
    %v429 = vpack.c.b16 %v414, %v413
    %v430 = vpack.c.b16 %v416, %v415
    %v431 = vpack.c.b16 %v418, %v417
    %v432 = vpack.c.b16 %v420, %v419
    %v433 = vpack.c.b16 %v422, %v421
    %v434 = vpack.c.b16 %v424, %v423
    %v435 = vpack.c.b16 %v426, %v425
    %v436 = vpack.c.b16 %v428, %v427
    %445 = vmatprep.subr.bf16.mxu0 0
    %446 = vmatpush1.bf16.msra.mxu0 %v429
    %447 = vmatprep.subr.bf16.mxu0 0
    %448 = vmatpush1.bf16.msra.mxu0 %v430
    %449 = vmatprep.subr.bf16.mxu0 0
    %450 = vmatpush1.bf16.msra.mxu0 %v431
    %451 = vmatprep.subr.bf16.mxu0 0
    %452 = vmatpush1.bf16.msra.mxu0 %v432
    %453 = vmatprep.subr.bf16.mxu0 0
    %454 = vmatpush1.bf16.msra.mxu0 %v433
    %455 = vmatprep.subr.bf16.mxu0 0
    %456 = vmatpush1.bf16.msra.mxu0 %v434
    %457 = vmatprep.subr.bf16.mxu0 0
    %458 = vmatpush1.bf16.msra.mxu0 %v435
    %459 = vmatprep.subr.bf16.mxu0 0
    %460 = vmatpush1.bf16.msra.mxu0 %v436
    %461 = vmatprep.subr.bf16.mxu0 0
    %462 = vmatpush1.bf16.msra.mxu0 0
    %463 = vmatprep.subr.bf16.mxu0 0
    %464 = vmatpush1.bf16.msra.mxu0 0
    %465 = vmatprep.subr.bf16.mxu0 0
    %466 = vmatpush1.bf16.msra.mxu0 0
    %467 = vmatprep.subr.bf16.mxu0 0
    %468 = vmatpush1.bf16.msra.mxu0 0
    %469 = vmatprep.subr.bf16.mxu0 0
    %470 = vmatpush1.bf16.msra.mxu0 0
    %471 = vmatprep.subr.bf16.mxu0 0
    %472 = vmatpush1.bf16.msra.mxu0 0
    %473 = vmatprep.subr.bf16.mxu0 0
    %474 = vmatpush1.bf16.msra.mxu0 0
    %475 = vmatprep.subr.bf16.mxu0 0
    %476 = vmatpush1.bf16.msra.mxu0 0
    %477 = vmatprep.mubr.bf16.mxu0 0
    %478 = vmatmul.mubr.bf16.gmra.mrb[0].mxu0 %v120
    %v479 = vpop.f32.mrb[0].mxu0
    %v480 = vadd.f32 %v395, %v479
    %v481 = vpop.f32.mrb[0].mxu0
    %v482 = vpop.f32.mrb[0].mxu0
    %v483 = vpop.f32.mrb[0].mxu0
    %484 = vdwg.mxu0
    %v485 = vld [vmem:[#allocation8] sm:$0xf]
    %v486 = vld [vmem:[#allocation8 + $0x4] sm:$0xf]
    %v487 = vld [vmem:[#allocation8 + $0x8] sm:$0xf]
    %v488 = vld [vmem:[#allocation8 + $0xc] sm:$0xf]
    %v489 = vld [vmem:[#allocation8 + $0x10] sm:$0xf]
    %v490 = vld [vmem:[#allocation8 + $0x14] sm:$0xf]
    %v491 = vld [vmem:[#allocation8 + $0x18] sm:$0xf]
    %v492 = vld [vmem:[#allocation8 + $0x1c] sm:$0xf]
    %v493 = vld [vmem:[#allocation8 + $0x20] sm:$0xf]
    %v494 = vld [vmem:[#allocation8 + $0x24] sm:$0xf]
    %v495 = vld [vmem:[#allocation8 + $0x28] sm:$0xf]
    %v496 = vld [vmem:[#allocation8 + $0x2c] sm:$0xf]
    %v497 = vld [vmem:[#allocation8 + $0x30] sm:$0xf]
    %v498 = vld [vmem:[#allocation8 + $0x34] sm:$0xf]
    %v499 = vld [vmem:[#allocation8 + $0x38] sm:$0xf]
    %v500 = vld [vmem:[#allocation8 + $0x3c] sm:$0xf]
    %v501 = vld [vmem:[%s5] sm:$0x1]
    %v503 = vlaneseq
    %v504 = vshrl.u32 %v503, 7
    %v505 = vsub.s32 0, %v504
    %v506 = vrot.slane %v501, %v505
    %v524 = vunpack.c.l.b16 %v485
    %v525 = vunpack.c.l.b16 %v486
    %v526 = vunpack.c.l.b16 %v487
    %v527 = vunpack.c.l.b16 %v488
    %v528 = vunpack.c.l.b16 %v489
    %v529 = vunpack.c.l.b16 %v490
    %v530 = vunpack.c.l.b16 %v491
    %v531 = vunpack.c.l.b16 %v492
    %v532 = vunpack.c.l.b16 %v493
    %v533 = vunpack.c.l.b16 %v494
    %v534 = vunpack.c.l.b16 %v495
    %v535 = vunpack.c.l.b16 %v496
    %v536 = vunpack.c.l.b16 %v497
    %v537 = vunpack.c.l.b16 %v498
    %v538 = vunpack.c.l.b16 %v499
    %v539 = vunpack.c.l.b16 %v500
    %v540 = vpack.c.b16 %v525, %v524
    %v541 = vpack.c.b16 %v527, %v526
    %v542 = vpack.c.b16 %v529, %v528
    %v543 = vpack.c.b16 %v531, %v530
    %v544 = vpack.c.b16 %v533, %v532
    %v545 = vpack.c.b16 %v535, %v534
    %v546 = vpack.c.b16 %v537, %v536
    %v547 = vpack.c.b16 %v539, %v538
    %556 = vmatprep.subr.bf16.mxu0 0
    %557 = vmatpush1.bf16.msra.mxu0 %v540
    %558 = vmatprep.subr.bf16.mxu0 0
    %559 = vmatpush1.bf16.msra.mxu0 %v541
    %560 = vmatprep.subr.bf16.mxu0 0
    %561 = vmatpush1.bf16.msra.mxu0 %v542
    %562 = vmatprep.subr.bf16.mxu0 0
    %563 = vmatpush1.bf16.msra.mxu0 %v543
    %564 = vmatprep.subr.bf16.mxu0 0
    %565 = vmatpush1.bf16.msra.mxu0 %v544
    %566 = vmatprep.subr.bf16.mxu0 0
    %567 = vmatpush1.bf16.msra.mxu0 %v545
    %568 = vmatprep.subr.bf16.mxu0 0
    %569 = vmatpush1.bf16.msra.mxu0 %v546
    %570 = vmatprep.subr.bf16.mxu0 0
    %571 = vmatpush1.bf16.msra.mxu0 %v547
    %572 = vmatprep.subr.bf16.mxu0 0
    %573 = vmatpush1.bf16.msra.mxu0 0
    %574 = vmatprep.subr.bf16.mxu0 0
    %575 = vmatpush1.bf16.msra.mxu0 0
    %576 = vmatprep.subr.bf16.mxu0 0
    %577 = vmatpush1.bf16.msra.mxu0 0
    %578 = vmatprep.subr.bf16.mxu0 0
    %579 = vmatpush1.bf16.msra.mxu0 0
    %580 = vmatprep.subr.bf16.mxu0 0
    %581 = vmatpush1.bf16.msra.mxu0 0
    %582 = vmatprep.subr.bf16.mxu0 0
    %583 = vmatpush1.bf16.msra.mxu0 0
    %584 = vmatprep.subr.bf16.mxu0 0
    %585 = vmatpush1.bf16.msra.mxu0 0
    %586 = vmatprep.subr.bf16.mxu0 0
    %587 = vmatpush1.bf16.msra.mxu0 0
    %588 = vmatprep.mubr.bf16.mxu0 0
    %589 = vmatmul.mubr.bf16.gmra.mrb[0].mxu0 %v118
    %v590 = vpop.f32.mrb[0].mxu0
    %v591 = vadd.f32 %v506, %v590
    %v592 = vpop.f32.mrb[0].mxu0
    %v593 = vpop.f32.mrb[0].mxu0
    %v594 = vpop.f32.mrb[0].mxu0
    %595 = vdwg.mxu0
    %v596 = vmul.f32 %v369, %v480
    %v597 = vadd.f32 %v591, %v596
    %v598 = vtanh.pop %v597
    %v599 = vsub.f32 %v119, %v598
    %v600 = vmul.f32 %v373, %v599
    %v601 = vadd.f32 %v598, %v600
    %602 = vst [vmem:[#allocation14] sm:$0xff] %v601
    %v603 = vpack.c.bf16 %v601, %v601
    %v604 = vld [vmem:[#allocation11] sm:$0xf]
    %v605 = vld [vmem:[#allocation11 + $0x4] sm:$0xf]
    %v606 = vld [vmem:[#allocation11 + $0x8] sm:$0xf]
    %v607 = vld [vmem:[#allocation11 + $0xc] sm:$0xf]
    %v608 = vld [vmem:[#allocation11 + $0x10] sm:$0xf]
    %v609 = vld [vmem:[#allocation11 + $0x14] sm:$0xf]
    %v610 = vld [vmem:[#allocation11 + $0x18] sm:$0xf]
    %v611 = vld [vmem:[#allocation11 + $0x1c] sm:$0xf]
    %v612 = vld [vmem:[#allocation11 + $0x20] sm:$0xf]
    %v613 = vld [vmem:[#allocation11 + $0x24] sm:$0xf]
    %v614 = vld [vmem:[#allocation11 + $0x28] sm:$0xf]
    %v615 = vld [vmem:[#allocation11 + $0x2c] sm:$0xf]
    %v616 = vld [vmem:[#allocation11 + $0x30] sm:$0xf]
    %v617 = vld [vmem:[#allocation11 + $0x34] sm:$0xf]
    %v618 = vld [vmem:[#allocation11 + $0x38] sm:$0xf]
    %v619 = vld [vmem:[#allocation11 + $0x3c] sm:$0xf]
    %v620 = vld [vmem:[%s9] sm:$0x1]
    %v622 = vlaneseq
    %v623 = vshrl.u32 %v622, 7
    %v624 = vsub.s32 0, %v623
    %v625 = vrot.slane %v620, %v624
    %v643 = vunpack.c.l.b16 %v604
    %v644 = vunpack.c.l.b16 %v605
    %v645 = vunpack.c.l.b16 %v606
    %v646 = vunpack.c.l.b16 %v607
    %v647 = vunpack.c.l.b16 %v608
    %v648 = vunpack.c.l.b16 %v609
    %v649 = vunpack.c.l.b16 %v610
    %v650 = vunpack.c.l.b16 %v611
    %v651 = vunpack.c.l.b16 %v612
    %v652 = vunpack.c.l.b16 %v613
    %v653 = vunpack.c.l.b16 %v614
    %v654 = vunpack.c.l.b16 %v615
    %v655 = vunpack.c.l.b16 %v616
    %v656 = vunpack.c.l.b16 %v617
    %v657 = vunpack.c.l.b16 %v618
    %v658 = vunpack.c.l.b16 %v619
    %v659 = vpack.c.b16 %v644, %v643
    %v660 = vpack.c.b16 %v646, %v645
    %v661 = vpack.c.b16 %v648, %v647
    %v662 = vpack.c.b16 %v650, %v649
    %v663 = vpack.c.b16 %v652, %v651
    %v664 = vpack.c.b16 %v654, %v653
    %v665 = vpack.c.b16 %v656, %v655
    %v666 = vpack.c.b16 %v658, %v657
    %675 = vmatprep.subr.bf16.mxu0 0
    %676 = vmatpush1.bf16.msra.mxu0 %v659
    %677 = vmatprep.subr.bf16.mxu0 0
    %678 = vmatpush1.bf16.msra.mxu0 %v660
    %679 = vmatprep.subr.bf16.mxu0 0
    %680 = vmatpush1.bf16.msra.mxu0 %v661
    %681 = vmatprep.subr.bf16.mxu0 0
    %682 = vmatpush1.bf16.msra.mxu0 %v662
    %683 = vmatprep.subr.bf16.mxu0 0
    %684 = vmatpush1.bf16.msra.mxu0 %v663
    %685 = vmatprep.subr.bf16.mxu0 0
    %686 = vmatpush1.bf16.msra.mxu0 %v664
    %687 = vmatprep.subr.bf16.mxu0 0
    %688 = vmatpush1.bf16.msra.mxu0 %v665
    %689 = vmatprep.subr.bf16.mxu0 0
    %690 = vmatpush1.bf16.msra.mxu0 %v666
    %691 = vmatprep.subr.bf16.mxu0 0
    %692 = vmatpush1.bf16.msra.mxu0 0
    %693 = vmatprep.subr.bf16.mxu0 0
    %694 = vmatpush1.bf16.msra.mxu0 0
    %695 = vmatprep.subr.bf16.mxu0 0
    %696 = vmatpush1.bf16.msra.mxu0 0
    %697 = vmatprep.subr.bf16.mxu0 0
    %698 = vmatpush1.bf16.msra.mxu0 0
    %699 = vmatprep.subr.bf16.mxu0 0
    %700 = vmatpush1.bf16.msra.mxu0 0
    %701 = vmatprep.subr.bf16.mxu0 0
    %702 = vmatpush1.bf16.msra.mxu0 0
    %703 = vmatprep.subr.bf16.mxu0 0
    %704 = vmatpush1.bf16.msra.mxu0 0
    %705 = vmatprep.subr.bf16.mxu0 0
    %706 = vmatpush1.bf16.msra.mxu0 0
    %707 = vmatprep.mubr.bf16.mxu0 0
    %708 = vmatmul.mubr.bf16.gmra.mrb[0].mxu0 %v603
    %v709 = vpop.f32.mrb[0].mxu0
    %v710 = vadd.f32 %v625, %v709
    %v711 = vpop.f32.mrb[0].mxu0
    %v712 = vpop.f32.mrb[0].mxu0
    %v713 = vpop.f32.mrb[0].mxu0
    %714 = vdwg.mxu0
    %715 = vst [vmem:[#allocation13] sm:$0xff] %v710
    // Predicated region
    $region66: #{tpu_custom_call.1} parent=1 // pred_check
      _
    $region67: #{tpu_custom_call.1} parent=1 // pred_check_branch
      %717 = sbr.rel (0) target = $region69
    $region68: #{tpu_custom_call.1} parent=1 // pred_region
      %s719 = ssub.s32 128, 128
      %720 = vsyncadd [#allocation4], %s719
      %s722 = sshll.u32 [#allocation13], 4
      %s723 = int_to_ptr.vmem [resolvable:$true] %s722
      %725 = dma.vmem_to_hbm [thread:$0]  %s723, 128, %s10, [#allocation4]
    $region69: #{tpu_custom_call.1} parent=1 // pred_fallthru
      _
    // Predicated region
    $region70: #{tpu_custom_call.1} parent=1 // pred_check
      _
    $region71: #{tpu_custom_call.1} parent=1 // pred_check_branch
      %727 = sbr.rel (0) target = $region73
    $region72: #{tpu_custom_call.1} parent=1 // pred_region
      %s729 = ssub.s32 128, 128
      %730 = vsyncadd [#allocation15], %s729
      %s732 = sshll.u32 [#allocation14], 4
      %s733 = int_to_ptr.vmem [resolvable:$true] %s732
      %735 = dma.vmem_to_hbm [thread:$0]  %s733, 128, %s11, [#allocation15]
    $region73: #{tpu_custom_call.1} parent=1 // pred_fallthru
      _
    // Predicated region
    $region74: #{tpu_custom_call.1} parent=1 // pred_check
      _
    $region75: #{tpu_custom_call.1} parent=1 // pred_check_branch
      %737 = sbr.rel (0) target = $region77
    $region76: #{tpu_custom_call.1} parent=1 // pred_region
      %738 = dma.done [#allocation4], 128
    $region77: #{tpu_custom_call.1} parent=1 // pred_fallthru
      _
    // Predicated region
    $region78: #{tpu_custom_call.1} parent=1 // pred_check
      _
    $region79: #{tpu_custom_call.1} parent=1 // pred_check_branch
      %740 = sbr.rel (0) target = $region81
    $region80: #{tpu_custom_call.1} parent=1 // pred_region
      %741 = dma.done [#allocation15], 128
    $region81: #{tpu_custom_call.1} parent=1 // pred_fallthru
      _
    %742 = vsyncpa [#allocation3], 1
    %743 = vsyncpa [#allocation6], 1
    %744 = vsyncpa [#allocation9], 1
    %745 = vsyncpa [#allocation12], 1
    %746 = vsyncpa [#allocation4], 1
    %747 = vsyncpa [#allocation15], 1

// kernel: tpu_custom_call.1
$region0: #{tpu_custom_call.1}
  #allocation0 [shape = 'u32[]', space=smem, size = 0x4, offset = 0x4, fixed_abs, tag = 'smem constant byte address 0x4 - core index']
  #allocation1 [shape = 'u32[144,128]{1,0:T(1,128)}', space=vmem, size = 0x12000, scoped, tag = 'internal scratch']
  %s0 = inlined_call_operand.hbm [shape: bf16[8,128], index: 0, kind: input, shape index: {}]
  %s1 = inlined_call_operand.hbm [shape: f32[8,128], index: 1, kind: input, shape index: {}]
  %s2 = inlined_call_operand.hbm [shape: bf16[256,256], index: 2, kind: input, shape index: {}]
  %s3 = inlined_call_operand.vmem [shape: f32[1,256], index: 3, kind: input, shape index: {}]
  %s4 = inlined_call_operand.hbm [shape: bf16[128,128], index: 4, kind: input, shape index: {}]
  %s5 = inlined_call_operand.vmem [shape: f32[1,128], index: 5, kind: input, shape index: {}]
  %s6 = inlined_call_operand.hbm [shape: bf16[128,128], index: 6, kind: input, shape index: {}]
  %s7 = inlined_call_operand.vmem [shape: f32[1,128], index: 7, kind: input, shape index: {}]
  %s8 = inlined_call_operand.hbm [shape: bf16[128,128], index: 8, kind: input, shape index: {}]
  %s9 = inlined_call_operand.vmem [shape: f32[1,128], index: 9, kind: input, shape index: {}]
  %s10 = inlined_call_operand.hbm [shape: f32[8,128], index: 10, kind: output, shape index: {0}]
  %s11 = inlined_call_operand.hbm [shape: f32[8,128], index: 11, kind: output, shape index: {1}]
  %12 = xla_tuple %s10, %s11
  %s13 = sld [smem:[#allocation0]]
  $region82: #{tpu_custom_call.1} parent=0
    _
  %s15 = ssub.s32 1, %s13
  %s16 = scalar_select 0, %s15, %s13
  $region1: #{tpu_custom_call.1} parent=0
    #allocation2 [shape = 'u8[2048]{0}', space=vmem, size = 0x800, scoped, tag = 'input window, operand 0, single buffered']
    #allocation3 [shape = 's32[1]{0}', space=sflag, size = 0x4, scoped, tag = 'scoped memory for tpu_custom_call.1']
    #allocation4 [shape = 's32[1]{0}', space=sflag, size = 0x4, scoped, tag = 'scoped memory for tpu_custom_call.1']
    #allocation5 [shape = 'u8[4096]{0}', space=vmem, size = 0x1000, scoped, tag = 'input window, operand 1, single buffered']
    #allocation6 [shape = 's32[1]{0}', space=sflag, size = 0x4, scoped, tag = 'scoped memory for tpu_custom_call.1']
    #allocation7 [shape = 'u8[131072]{0}', space=vmem, size = 0x20000, scoped, tag = 'input window, operand 2, single buffered']
    #allocation8 [shape = 'u8[32768]{0}', space=vmem, size = 0x8000, scoped, tag = 'input window, operand 4, single buffered']
    #allocation9 [shape = 's32[1]{0}', space=sflag, size = 0x4, scoped, tag = 'scoped memory for tpu_custom_call.1']
    #allocation10 [shape = 'u8[32768]{0}', space=vmem, size = 0x8000, scoped, tag = 'input window, operand 6, single buffered']
    #allocation11 [shape = 'u8[32768]{0}', space=vmem, size = 0x8000, scoped, tag = 'input window, operand 8, single buffered']
    #allocation12 [shape = 's32[1]{0}', space=sflag, size = 0x4, scoped, tag = 'scoped memory for tpu_custom_call.1']
    #allocation13 [shape = 'u8[4096]{0}', space=vmem, size = 0x1000, scoped, tag = 'output window, operand 0, single buffered']
    #allocation14 [shape = 'u8[4096]{0}', space=vmem, size = 0x1000, scoped, tag = 'output window, operand 1, single buffered']
    #allocation15 [shape = 's32[1]{0}', space=sflag, size = 0x4, scoped, tag = 'scoped memory for tpu_custom_call.1']
    %17 = vsyncpa [#allocation3], 0
    %18 = vsyncpa [#allocation6], 0
    %19 = vsyncpa [#allocation9], 0
    %20 = vsyncpa [#allocation12], 0
    %21 = vsyncpa [#allocation4], 0
    %22 = vsyncpa [#allocation15], 0
    // Predicated region
    $region2: #{tpu_custom_call.1} parent=1 // pred_check
      _
    $region3: #{tpu_custom_call.1} parent=1 // pred_check_branch
      %24 = sbr.rel (0) target = $region5
    $region4: #{tpu_custom_call.1} parent=1 // pred_region
      %s26 = ssub.s32 64, 64
      %27 = vsyncadd [#allocation3], %s26
      %s29 = sshll.u32 [#allocation2], 4
      %s30 = int_to_ptr.vmem [resolvable:$true] %s29
      %32 = dma.hbm_to_vmem [thread:$0]  %s0, 64, %s30, [#allocation3]
    $region5: #{tpu_custom_call.1} parent=1 // pred_fallthru
      _
    // Predicated region
    $region6: #{tpu_custom_call.1} parent=1 // pred_check
      _
    $region7: #{tpu_custom_call.1} parent=1 // pred_check_branch
      %34 = sbr.rel (0) target = $region9
    $region8: #{tpu_custom_call.1} parent=1 // pred_region
      %s36 = ssub.s32 128, 128
      %37 = vsyncadd [#allocation6], %s36
      %s39 = sshll.u32 [#allocation5], 4
      %s40 = int_to_ptr.vmem [resolvable:$true] %s39
      %42 = dma.hbm_to_vmem [thread:$0]  %s1, 128, %s40, [#allocation6]
    $region9: #{tpu_custom_call.1} parent=1 // pred_fallthru
      _
    // Predicated region
    $region10: #{tpu_custom_call.1} parent=1 // pred_check
      _
    $region11: #{tpu_custom_call.1} parent=1 // pred_check_branch
      %44 = sbr.rel (0) target = $region13
    $region12: #{tpu_custom_call.1} parent=1 // pred_region
      %s46 = ssub.s32 4096, 4096
      %47 = vsyncadd [#allocation6], %s46
      %s48 = sshll.u32 [#allocation7], 4
      %s49 = int_to_ptr.vmem [resolvable:$true] %s48
      %54 = dma.hbm_to_vmem [thread:$0]  %s2, 4096, %s49, [#allocation6], 128, 128, 8
    $region13: #{tpu_custom_call.1} parent=1 // pred_fallthru
      _
    // Predicated region
    $region14: #{tpu_custom_call.1} parent=1 // pred_check
      _
    $region15: #{tpu_custom_call.1} parent=1 // pred_check_branch
      %56 = sbr.rel (0) target = $region17
    $region16: #{tpu_custom_call.1} parent=1 // pred_region
      _
    $region17: #{tpu_custom_call.1} parent=1 // pred_fallthru
      _
    // Predicated region
    $region18: #{tpu_custom_call.1} parent=1 // pred_check
      _
    $region19: #{tpu_custom_call.1} parent=1 // pred_check_branch
      %58 = sbr.rel (0) target = $region21
    $region20: #{tpu_custom_call.1} parent=1 // pred_region
      %s60 = ssub.s32 1024, 1024
      %61 = vsyncadd [#allocation9], %s60
      %s62 = sshll.u32 [#allocation8], 4
      %s63 = int_to_ptr.vmem [resolvable:$true] %s62
      %68 = dma.hbm_to_vmem [thread:$0]  %s4, 1024, %s63, [#allocation9], 64, 64, 4
    $region21: #{tpu_custom_call.1} parent=1 // pred_fallthru
      _
    // Predicated region
    $region22: #{tpu_custom_call.1} parent=1 // pred_check
      _
    $region23: #{tpu_custom_call.1} parent=1 // pred_check_branch
      %70 = sbr.rel (0) target = $region25
    $region24: #{tpu_custom_call.1} parent=1 // pred_region
      _
    $region25: #{tpu_custom_call.1} parent=1 // pred_fallthru
      _
    // Predicated region
    $region26: #{tpu_custom_call.1} parent=1 // pred_check
      _
    $region27: #{tpu_custom_call.1} parent=1 // pred_check_branch
      %72 = sbr.rel (0) target = $region29
    $region28: #{tpu_custom_call.1} parent=1 // pred_region
      %s74 = ssub.s32 1024, 1024
      %75 = vsyncadd [#allocation9], %s74
      %s76 = sshll.u32 [#allocation10], 4
      %s77 = int_to_ptr.vmem [resolvable:$true] %s76
      %82 = dma.hbm_to_vmem [thread:$0]  %s6, 1024, %s77, [#allocation9], 64, 64, 4
    $region29: #{tpu_custom_call.1} parent=1 // pred_fallthru
      _
    // Predicated region
    $region30: #{tpu_custom_call.1} parent=1 // pred_check
      _
    $region31: #{tpu_custom_call.1} parent=1 // pred_check_branch
      %84 = sbr.rel (0) target = $region33
    $region32: #{tpu_custom_call.1} parent=1 // pred_region
      _
    $region33: #{tpu_custom_call.1} parent=1 // pred_fallthru
      _
    // Predicated region
    $region34: #{tpu_custom_call.1} parent=1 // pred_check
      _
    $region35: #{tpu_custom_call.1} parent=1 // pred_check_branch
      %86 = sbr.rel (0) target = $region37
    $region36: #{tpu_custom_call.1} parent=1 // pred_region
      %s88 = ssub.s32 1024, 1024
      %89 = vsyncadd [#allocation12], %s88
      %s90 = sshll.u32 [#allocation11], 4
      %s91 = int_to_ptr.vmem [resolvable:$true] %s90
      %96 = dma.hbm_to_vmem [thread:$0]  %s8, 1024, %s91, [#allocation12], 64, 64, 4
    $region37: #{tpu_custom_call.1} parent=1 // pred_fallthru
      _
    // Predicated region
    $region38: #{tpu_custom_call.1} parent=1 // pred_check
      _
    $region39: #{tpu_custom_call.1} parent=1 // pred_check_branch
      %98 = sbr.rel (0) target = $region41
    $region40: #{tpu_custom_call.1} parent=1 // pred_region
      _
    $region41: #{tpu_custom_call.1} parent=1 // pred_fallthru
      _
    // Predicated region
    $region42: #{tpu_custom_call.1} parent=1 // pred_check
      _
    $region43: #{tpu_custom_call.1} parent=1 // pred_check_branch
      %100 = sbr.rel (0) target = $region45
    $region44: #{tpu_custom_call.1} parent=1 // pred_region
      %101 = dma.done [#allocation3], 64
    $region45: #{tpu_custom_call.1} parent=1 // pred_fallthru
      _
    // Predicated region
    $region46: #{tpu_custom_call.1} parent=1 // pred_check
      _
    $region47: #{tpu_custom_call.1} parent=1 // pred_check_branch
      %103 = sbr.rel (0) target = $region49
    $region48: #{tpu_custom_call.1} parent=1 // pred_region
      %104 = dma.done [#allocation6], 128
    $region49: #{tpu_custom_call.1} parent=1 // pred_fallthru
      _
    // Predicated region
    $region50: #{tpu_custom_call.1} parent=1 // pred_check
      _
    $region51: #{tpu_custom_call.1} parent=1 // pred_check_branch
      %106 = sbr.rel (0) target = $region53
    $region52: #{tpu_custom_call.1} parent=1 // pred_region
      %107 = dma.done [#allocation6], 4096
    $region53: #{tpu_custom_call.1} parent=1 // pred_fallthru
      _
    // Predicated region
    $region54: #{tpu_custom_call.1} parent=1 // pred_check
      _
    $region55: #{tpu_custom_call.1} parent=1 // pred_check_branch
      %109 = sbr.rel (0) target = $region57
    $region56: #{tpu_custom_call.1} parent=1 // pred_region
      %110 = dma.done [#allocation9], 1024
    $region57: #{tpu_custom_call.1} parent=1 // pred_fallthru
      _
    // Predicated region
    $region58: #{tpu_custom_call.1} parent=1 // pred_check
      _
    $region59: #{tpu_custom_call.1} parent=1 // pred_check_branch
      %112 = sbr.rel (0) target = $region61
    $region60: #{tpu_custom_call.1} parent=1 // pred_region
      %113 = dma.done [#allocation9], 1024
    $region61: #{tpu_custom_call.1} parent=1 // pred_fallthru
      _
    // Predicated region
    $region62: #{tpu_custom_call.1} parent=1 // pred_check
      _
    $region63: #{tpu_custom_call.1} parent=1 // pred_check_branch
      %115 = sbr.rel (0) target = $region65
    $region64: #{tpu_custom_call.1} parent=1 // pred_region
      %116 = dma.done [#allocation12], 1024
    $region65: #{tpu_custom_call.1} parent=1 // pred_fallthru
      _
    %v118 = vld [vmem:[#allocation2] sm:$0xf]
    %v119 = vld [vmem:[#allocation5] sm:$0xff]
    %v120 = vpack.c.bf16 %v119, %v119
    %v121 = vld [vmem:[#allocation7] sm:$0xff]
    %v122 = vld [vmem:[#allocation7 + $0x8] sm:$0xff]
    %v123 = vld [vmem:[#allocation7 + $0x10] sm:$0xff]
    %v124 = vld [vmem:[#allocation7 + $0x18] sm:$0xff]
    %v125 = vld [vmem:[#allocation7 + $0x20] sm:$0xff]
    %v126 = vld [vmem:[#allocation7 + $0x28] sm:$0xff]
    %v127 = vld [vmem:[#allocation7 + $0x30] sm:$0xff]
    %v128 = vld [vmem:[#allocation7 + $0x38] sm:$0xff]
    %v129 = vld [vmem:[#allocation7 + $0x40] sm:$0xff]
    %v130 = vld [vmem:[#allocation7 + $0x48] sm:$0xff]
    %v131 = vld [vmem:[#allocation7 + $0x50] sm:$0xff]
    %v132 = vld [vmem:[#allocation7 + $0x58] sm:$0xff]
    %v133 = vld [vmem:[#allocation7 + $0x60] sm:$0xff]
    %v134 = vld [vmem:[#allocation7 + $0x68] sm:$0xff]
    %v135 = vld [vmem:[#allocation7 + $0x70] sm:$0xff]
    %v136 = vld [vmem:[#allocation7 + $0x78] sm:$0xff]
    %v137 = vld [vmem:[#allocation7 + $0x80] sm:$0xff]
    %v138 = vld [vmem:[#allocation7 + $0x88] sm:$0xff]
    %v139 = vld [vmem:[#allocation7 + $0x90] sm:$0xff]
    %v140 = vld [vmem:[#allocation7 + $0x98] sm:$0xff]
    %v141 = vld [vmem:[#allocation7 + $0xa0] sm:$0xff]
    %v142 = vld [vmem:[#allocation7 + $0xa8] sm:$0xff]
    %v143 = vld [vmem:[#allocation7 + $0xb0] sm:$0xff]
    %v144 = vld [vmem:[#allocation7 + $0xb8] sm:$0xff]
    %v145 = vld [vmem:[#allocation7 + $0xc0] sm:$0xff]
    %v146 = vld [vmem:[#allocation7 + $0xc8] sm:$0xff]
    %v147 = vld [vmem:[#allocation7 + $0xd0] sm:$0xff]
    %v148 = vld [vmem:[#allocation7 + $0xd8] sm:$0xff]
    %v149 = vld [vmem:[#allocation7 + $0xe0] sm:$0xff]
    %v150 = vld [vmem:[#allocation7 + $0xe8] sm:$0xff]
    %v151 = vld [vmem:[#allocation7 + $0xf0] sm:$0xff]
    %v152 = vld [vmem:[#allocation7 + $0xf8] sm:$0xff]
    %v153 = vld [vmem:[%s3] sm:$0x3]
    %v155 = vlaneseq
    %v156 = vshrl.u32 %v155, 7
    %v157 = vsub.s32 0, %v156
    %v158 = vrot.slane %v153, %v157
    %v159 = vlaneseq
    %v160 = vshrl.u32 %v159, 7
    %v161 = vsub.s32 1, %v160
    %v162 = vrot.slane %v153, %v161
    %v197 = vunpack.c.l.b16 %v121
    %v198 = vunpack.c.h.b16 %v121
    %v199 = vunpack.c.l.b16 %v122
    %v200 = vunpack.c.h.b16 %v122
    %v201 = vunpack.c.l.b16 %v123
    %v202 = vunpack.c.h.b16 %v123
    %v203 = vunpack.c.l.b16 %v124
    %v204 = vunpack.c.h.b16 %v124
    %v205 = vunpack.c.l.b16 %v125
    %v206 = vunpack.c.h.b16 %v125
    %v207 = vunpack.c.l.b16 %v126
    %v208 = vunpack.c.h.b16 %v126
    %v209 = vunpack.c.l.b16 %v127
    %v210 = vunpack.c.h.b16 %v127
    %v211 = vunpack.c.l.b16 %v128
    %v212 = vunpack.c.h.b16 %v128
    %v213 = vunpack.c.l.b16 %v129
    %v214 = vunpack.c.h.b16 %v129
    %v215 = vunpack.c.l.b16 %v130
    %v216 = vunpack.c.h.b16 %v130
    %v217 = vunpack.c.l.b16 %v131
    %v218 = vunpack.c.h.b16 %v131
    %v219 = vunpack.c.l.b16 %v132
    %v220 = vunpack.c.h.b16 %v132
    %v221 = vunpack.c.l.b16 %v133
    %v222 = vunpack.c.h.b16 %v133
    %v223 = vunpack.c.l.b16 %v134
    %v224 = vunpack.c.h.b16 %v134
    %v225 = vunpack.c.l.b16 %v135
    %v226 = vunpack.c.h.b16 %v135
    %v227 = vunpack.c.l.b16 %v136
    %v228 = vunpack.c.h.b16 %v136
    %v229 = vunpack.c.l.b16 %v137
    %v230 = vunpack.c.h.b16 %v137
    %v231 = vunpack.c.l.b16 %v138
    %v232 = vunpack.c.h.b16 %v138
    %v233 = vunpack.c.l.b16 %v139
    %v234 = vunpack.c.h.b16 %v139
    %v235 = vunpack.c.l.b16 %v140
    %v236 = vunpack.c.h.b16 %v140
    %v237 = vunpack.c.l.b16 %v141
    %v238 = vunpack.c.h.b16 %v141
    %v239 = vunpack.c.l.b16 %v142
    %v240 = vunpack.c.h.b16 %v142
    %v241 = vunpack.c.l.b16 %v143
    %v242 = vunpack.c.h.b16 %v143
    %v243 = vunpack.c.l.b16 %v144
    %v244 = vunpack.c.h.b16 %v144
    %v245 = vunpack.c.l.b16 %v145
    %v246 = vunpack.c.h.b16 %v145
    %v247 = vunpack.c.l.b16 %v146
    %v248 = vunpack.c.h.b16 %v146
    %v249 = vunpack.c.l.b16 %v147
    %v250 = vunpack.c.h.b16 %v147
    %v251 = vunpack.c.l.b16 %v148
    %v252 = vunpack.c.h.b16 %v148
    %v253 = vunpack.c.l.b16 %v149
    %v254 = vunpack.c.h.b16 %v149
    %v255 = vunpack.c.l.b16 %v150
    %v256 = vunpack.c.h.b16 %v150
    %v257 = vunpack.c.l.b16 %v151
    %v258 = vunpack.c.h.b16 %v151
    %v259 = vunpack.c.l.b16 %v152
    %v260 = vunpack.c.h.b16 %v152
    %v261 = vpack.c.b16 %v199, %v197
    %v262 = vpack.c.b16 %v200, %v198
    %v263 = vpack.c.b16 %v203, %v201
    %v264 = vpack.c.b16 %v204, %v202
    %v265 = vpack.c.b16 %v207, %v205
    %v266 = vpack.c.b16 %v208, %v206
    %v267 = vpack.c.b16 %v211, %v209
    %v268 = vpack.c.b16 %v212, %v210
    %v269 = vpack.c.b16 %v215, %v213
    %v270 = vpack.c.b16 %v216, %v214
    %v271 = vpack.c.b16 %v219, %v217
    %v272 = vpack.c.b16 %v220, %v218
    %v273 = vpack.c.b16 %v223, %v221
    %v274 = vpack.c.b16 %v224, %v222
    %v275 = vpack.c.b16 %v227, %v225
    %v276 = vpack.c.b16 %v228, %v226
    %v277 = vpack.c.b16 %v231, %v229
    %v278 = vpack.c.b16 %v232, %v230
    %v279 = vpack.c.b16 %v235, %v233
    %v280 = vpack.c.b16 %v236, %v234
    %v281 = vpack.c.b16 %v239, %v237
    %v282 = vpack.c.b16 %v240, %v238
    %v283 = vpack.c.b16 %v243, %v241
    %v284 = vpack.c.b16 %v244, %v242
    %v285 = vpack.c.b16 %v247, %v245
    %v286 = vpack.c.b16 %v248, %v246
    %v287 = vpack.c.b16 %v251, %v249
    %v288 = vpack.c.b16 %v252, %v250
    %v289 = vpack.c.b16 %v255, %v253
    %v290 = vpack.c.b16 %v256, %v254
    %v291 = vpack.c.b16 %v259, %v257
    %v292 = vpack.c.b16 %v260, %v258
    %325 = vmatprep.subr.bf16.mxu0 %v262
    %326 = vmatpush1.bf16.msra.mxu0 %v261
    %327 = vmatprep.subr.bf16.mxu0 %v264
    %328 = vmatpush1.bf16.msra.mxu0 %v263
    %329 = vmatprep.subr.bf16.mxu0 %v266
    %330 = vmatpush1.bf16.msra.mxu0 %v265
    %331 = vmatprep.subr.bf16.mxu0 %v268
    %332 = vmatpush1.bf16.msra.mxu0 %v267
    %333 = vmatprep.subr.bf16.mxu0 %v270
    %334 = vmatpush1.bf16.msra.mxu0 %v269
    %335 = vmatprep.subr.bf16.mxu0 %v272
    %336 = vmatpush1.bf16.msra.mxu0 %v271
    %337 = vmatprep.subr.bf16.mxu0 %v274
    %338 = vmatpush1.bf16.msra.mxu0 %v273
    %339 = vmatprep.subr.bf16.mxu0 %v276
    %340 = vmatpush1.bf16.msra.mxu0 %v275
    %341 = vmatprep.subr.bf16.mxu0 %v278
    %342 = vmatpush1.bf16.msra.mxu0 %v277
    %343 = vmatprep.subr.bf16.mxu0 %v280
    %344 = vmatpush1.bf16.msra.mxu0 %v279
    %345 = vmatprep.subr.bf16.mxu0 %v282
    %346 = vmatpush1.bf16.msra.mxu0 %v281
    %347 = vmatprep.subr.bf16.mxu0 %v284
    %348 = vmatpush1.bf16.msra.mxu0 %v283
    %349 = vmatprep.subr.bf16.mxu0 %v286
    %350 = vmatpush1.bf16.msra.mxu0 %v285
    %351 = vmatprep.subr.bf16.mxu0 %v288
    %352 = vmatpush1.bf16.msra.mxu0 %v287
    %353 = vmatprep.subr.bf16.mxu0 %v290
    %354 = vmatpush1.bf16.msra.mxu0 %v289
    %355 = vmatprep.subr.bf16.mxu0 %v292
    %356 = vmatpush1.bf16.msra.mxu0 %v291
    %357 = vmatprep.mubr.bf16.mxu0 %v120
    %358 = vmatmul.mubr.bf16.gmra.mrb[0].mxu0 %v118
    %v359 = vpop.f32.mrb[0].mxu0
    %v360 = vadd.f32 %v158, %v359
    %v361 = vpop.f32.mrb[0].mxu0
    %v362 = vadd.f32 %v162, %v361
    %v363 = vpop.f32.mrb[0].mxu0
    %v364 = vpop.f32.mrb[0].mxu0
    %365 = vdwg.mxu0
    %v366 = vmul.f32 %v360, 0.5
    %v367 = vtanh.pop %v366
    %v368 = vadd.f32 %v367, 1.0
    %v369 = vmul.f32 %v368, 0.5
    %v370 = vmul.f32 %v362, 0.5
    %v371 = vtanh.pop %v370
    %v372 = vadd.f32 %v371, 1.0
    %v373 = vmul.f32 %v372, 0.5
    %v374 = vld [vmem:[#allocation10] sm:$0xf]
    %v375 = vld [vmem:[#allocation10 + $0x4] sm:$0xf]
    %v376 = vld [vmem:[#allocation10 + $0x8] sm:$0xf]
    %v377 = vld [vmem:[#allocation10 + $0xc] sm:$0xf]
    %v378 = vld [vmem:[#allocation10 + $0x10] sm:$0xf]
    %v379 = vld [vmem:[#allocation10 + $0x14] sm:$0xf]
    %v380 = vld [vmem:[#allocation10 + $0x18] sm:$0xf]
    %v381 = vld [vmem:[#allocation10 + $0x1c] sm:$0xf]
    %v382 = vld [vmem:[#allocation10 + $0x20] sm:$0xf]
    %v383 = vld [vmem:[#allocation10 + $0x24] sm:$0xf]
    %v384 = vld [vmem:[#allocation10 + $0x28] sm:$0xf]
    %v385 = vld [vmem:[#allocation10 + $0x2c] sm:$0xf]
    %v386 = vld [vmem:[#allocation10 + $0x30] sm:$0xf]
    %v387 = vld [vmem:[#allocation10 + $0x34] sm:$0xf]
    %v388 = vld [vmem:[#allocation10 + $0x38] sm:$0xf]
    %v389 = vld [vmem:[#allocation10 + $0x3c] sm:$0xf]
    %v390 = vld [vmem:[%s7] sm:$0x1]
    %v392 = vlaneseq
    %v393 = vshrl.u32 %v392, 7
    %v394 = vsub.s32 0, %v393
    %v395 = vrot.slane %v390, %v394
    %v413 = vunpack.c.l.b16 %v374
    %v414 = vunpack.c.l.b16 %v375
    %v415 = vunpack.c.l.b16 %v376
    %v416 = vunpack.c.l.b16 %v377
    %v417 = vunpack.c.l.b16 %v378
    %v418 = vunpack.c.l.b16 %v379
    %v419 = vunpack.c.l.b16 %v380
    %v420 = vunpack.c.l.b16 %v381
    %v421 = vunpack.c.l.b16 %v382
    %v422 = vunpack.c.l.b16 %v383
    %v423 = vunpack.c.l.b16 %v384
    %v424 = vunpack.c.l.b16 %v385
    %v425 = vunpack.c.l.b16 %v386
    %v426 = vunpack.c.l.b16 %v387
    %v427 = vunpack.c.l.b16 %v388
    %v428 = vunpack.c.l.b16 %v389
    %v429 = vpack.c.b16 %v414, %v413
    %v430 = vpack.c.b16 %v416, %v415
    %v431 = vpack.c.b16 %v418, %v417
    %v432 = vpack.c.b16 %v420, %v419
    %v433 = vpack.c.b16 %v422, %v421
    %v434 = vpack.c.b16 %v424, %v423
    %v435 = vpack.c.b16 %v426, %v425
    %v436 = vpack.c.b16 %v428, %v427
    %445 = vmatprep.subr.bf16.mxu0 0
    %446 = vmatpush1.bf16.msra.mxu0 %v429
    %447 = vmatprep.subr.bf16.mxu0 0
    %448 = vmatpush1.bf16.msra.mxu0 %v430
    %449 = vmatprep.subr.bf16.mxu0 0
    %450 = vmatpush1.bf16.msra.mxu0 %v431
    %451 = vmatprep.subr.bf16.mxu0 0
    %452 = vmatpush1.bf16.msra.mxu0 %v432
    %453 = vmatprep.subr.bf16.mxu0 0
    %454 = vmatpush1.bf16.msra.mxu0 %v433
    %455 = vmatprep.subr.bf16.mxu0 0
    %456 = vmatpush1.bf16.msra.mxu0 %v434
    %457 = vmatprep.subr.bf16.mxu0 0
    %458 = vmatpush1.bf16.msra.mxu0 %v435
    %459 = vmatprep.subr.bf16.mxu0 0
    %460 = vmatpush1.bf16.msra.mxu0 %v436
    %461 = vmatprep.subr.bf16.mxu0 0
    %462 = vmatpush1.bf16.msra.mxu0 0
    %463 = vmatprep.subr.bf16.mxu0 0
    %464 = vmatpush1.bf16.msra.mxu0 0
    %465 = vmatprep.subr.bf16.mxu0 0
    %466 = vmatpush1.bf16.msra.mxu0 0
    %467 = vmatprep.subr.bf16.mxu0 0
    %468 = vmatpush1.bf16.msra.mxu0 0
    %469 = vmatprep.subr.bf16.mxu0 0
    %470 = vmatpush1.bf16.msra.mxu0 0
    %471 = vmatprep.subr.bf16.mxu0 0
    %472 = vmatpush1.bf16.msra.mxu0 0
    %473 = vmatprep.subr.bf16.mxu0 0
    %474 = vmatpush1.bf16.msra.mxu0 0
    %475 = vmatprep.subr.bf16.mxu0 0
    %476 = vmatpush1.bf16.msra.mxu0 0
    %477 = vmatprep.mubr.bf16.mxu0 0
    %478 = vmatmul.mubr.bf16.gmra.mrb[0].mxu0 %v120
    %v479 = vpop.f32.mrb[0].mxu0
    %v480 = vadd.f32 %v395, %v479
    %v481 = vpop.f32.mrb[0].mxu0
    %v482 = vpop.f32.mrb[0].mxu0
    %v483 = vpop.f32.mrb[0].mxu0
    %484 = vdwg.mxu0
    %v485 = vld [vmem:[#allocation8] sm:$0xf]
    %v486 = vld [vmem:[#allocation8 + $0x4] sm:$0xf]
    %v487 = vld [vmem:[#allocation8 + $0x8] sm:$0xf]
    %v488 = vld [vmem:[#allocation8 + $0xc] sm:$0xf]
    %v489 = vld [vmem:[#allocation8 + $0x10] sm:$0xf]
    %v490 = vld [vmem:[#allocation8 + $0x14] sm:$0xf]
    %v491 = vld [vmem:[#allocation8 + $0x18] sm:$0xf]
    %v492 = vld [vmem:[#allocation8 + $0x1c] sm:$0xf]
    %v493 = vld [vmem:[#allocation8 + $0x20] sm:$0xf]
    %v494 = vld [vmem:[#allocation8 + $0x24] sm:$0xf]
    %v495 = vld [vmem:[#allocation8 + $0x28] sm:$0xf]
    %v496 = vld [vmem:[#allocation8 + $0x2c] sm:$0xf]
    %v497 = vld [vmem:[#allocation8 + $0x30] sm:$0xf]
    %v498 = vld [vmem:[#allocation8 + $0x34] sm:$0xf]
    %v499 = vld [vmem:[#allocation8 + $0x38] sm:$0xf]
    %v500 = vld [vmem:[#allocation8 + $0x3c] sm:$0xf]
    %v501 = vld [vmem:[%s5] sm:$0x1]
    %v503 = vlaneseq
    %v504 = vshrl.u32 %v503, 7
    %v505 = vsub.s32 0, %v504
    %v506 = vrot.slane %v501, %v505
    %v524 = vunpack.c.l.b16 %v485
    %v525 = vunpack.c.l.b16 %v486
    %v526 = vunpack.c.l.b16 %v487
    %v527 = vunpack.c.l.b16 %v488
    %v528 = vunpack.c.l.b16 %v489
    %v529 = vunpack.c.l.b16 %v490
    %v530 = vunpack.c.l.b16 %v491
    %v531 = vunpack.c.l.b16 %v492
    %v532 = vunpack.c.l.b16 %v493
    %v533 = vunpack.c.l.b16 %v494
    %v534 = vunpack.c.l.b16 %v495
    %v535 = vunpack.c.l.b16 %v496
    %v536 = vunpack.c.l.b16 %v497
    %v537 = vunpack.c.l.b16 %v498
    %v538 = vunpack.c.l.b16 %v499
    %v539 = vunpack.c.l.b16 %v500
    %v540 = vpack.c.b16 %v525, %v524
    %v541 = vpack.c.b16 %v527, %v526
    %v542 = vpack.c.b16 %v529, %v528
    %v543 = vpack.c.b16 %v531, %v530
    %v544 = vpack.c.b16 %v533, %v532
    %v545 = vpack.c.b16 %v535, %v534
    %v546 = vpack.c.b16 %v537, %v536
    %v547 = vpack.c.b16 %v539, %v538
    %556 = vmatprep.subr.bf16.mxu0 0
    %557 = vmatpush1.bf16.msra.mxu0 %v540
    %558 = vmatprep.subr.bf16.mxu0 0
    %559 = vmatpush1.bf16.msra.mxu0 %v541
    %560 = vmatprep.subr.bf16.mxu0 0
    %561 = vmatpush1.bf16.msra.mxu0 %v542
    %562 = vmatprep.subr.bf16.mxu0 0
    %563 = vmatpush1.bf16.msra.mxu0 %v543
    %564 = vmatprep.subr.bf16.mxu0 0
    %565 = vmatpush1.bf16.msra.mxu0 %v544
    %566 = vmatprep.subr.bf16.mxu0 0
    %567 = vmatpush1.bf16.msra.mxu0 %v545
    %568 = vmatprep.subr.bf16.mxu0 0
    %569 = vmatpush1.bf16.msra.mxu0 %v546
    %570 = vmatprep.subr.bf16.mxu0 0
    %571 = vmatpush1.bf16.msra.mxu0 %v547
    %572 = vmatprep.subr.bf16.mxu0 0
    %573 = vmatpush1.bf16.msra.mxu0 0
    %574 = vmatprep.subr.bf16.mxu0 0
    %575 = vmatpush1.bf16.msra.mxu0 0
    %576 = vmatprep.subr.bf16.mxu0 0
    %577 = vmatpush1.bf16.msra.mxu0 0
    %578 = vmatprep.subr.bf16.mxu0 0
    %579 = vmatpush1.bf16.msra.mxu0 0
    %580 = vmatprep.subr.bf16.mxu0 0
    %581 = vmatpush1.bf16.msra.mxu0 0
    %582 = vmatprep.subr.bf16.mxu0 0
    %583 = vmatpush1.bf16.msra.mxu0 0
    %584 = vmatprep.subr.bf16.mxu0 0
    %585 = vmatpush1.bf16.msra.mxu0 0
    %586 = vmatprep.subr.bf16.mxu0 0
    %587 = vmatpush1.bf16.msra.mxu0 0
    %588 = vmatprep.mubr.bf16.mxu0 0
    %589 = vmatmul.mubr.bf16.gmra.mrb[0].mxu0 %v118
    %v590 = vpop.f32.mrb[0].mxu0
    %v591 = vadd.f32 %v506, %v590
    %v592 = vpop.f32.mrb[0].mxu0
    %v593 = vpop.f32.mrb[0].mxu0
    %v594 = vpop.f32.mrb[0].mxu0
    %595 = vdwg.mxu0
    %v596 = vmul.f32 %v369, %v480
    %v597 = vadd.f32 %v591, %v596
    %v598 = vtanh.pop %v597
    %v599 = vsub.f32 %v119, %v598
    %v600 = vmul.f32 %v373, %v599
    %v601 = vadd.f32 %v598, %v600
    %602 = vst [vmem:[#allocation14] sm:$0xff] %v601
    %v603 = vpack.c.bf16 %v601, %v601
    %v604 = vld [vmem:[#allocation11] sm:$0xf]
    %v605 = vld [vmem:[#allocation11 + $0x4] sm:$0xf]
    %v606 = vld [vmem:[#allocation11 + $0x8] sm:$0xf]
    %v607 = vld [vmem:[#allocation11 + $0xc] sm:$0xf]
    %v608 = vld [vmem:[#allocation11 + $0x10] sm:$0xf]
    %v609 = vld [vmem:[#allocation11 + $0x14] sm:$0xf]
    %v610 = vld [vmem:[#allocation11 + $0x18] sm:$0xf]
    %v611 = vld [vmem:[#allocation11 + $0x1c] sm:$0xf]
    %v612 = vld [vmem:[#allocation11 + $0x20] sm:$0xf]
    %v613 = vld [vmem:[#allocation11 + $0x24] sm:$0xf]
    %v614 = vld [vmem:[#allocation11 + $0x28] sm:$0xf]
    %v615 = vld [vmem:[#allocation11 + $0x2c] sm:$0xf]
    %v616 = vld [vmem:[#allocation11 + $0x30] sm:$0xf]
    %v617 = vld [vmem:[#allocation11 + $0x34] sm:$0xf]
    %v618 = vld [vmem:[#allocation11 + $0x38] sm:$0xf]
    %v619 = vld [vmem:[#allocation11 + $0x3c] sm:$0xf]
    %v620 = vld [vmem:[%s9] sm:$0x1]
    %v622 = vlaneseq
    %v623 = vshrl.u32 %v622, 7
    %v624 = vsub.s32 0, %v623
    %v625 = vrot.slane %v620, %v624
    %v643 = vunpack.c.l.b16 %v604
    %v644 = vunpack.c.l.b16 %v605
    %v645 = vunpack.c.l.b16 %v606
    %v646 = vunpack.c.l.b16 %v607
    %v647 = vunpack.c.l.b16 %v608
    %v648 = vunpack.c.l.b16 %v609
    %v649 = vunpack.c.l.b16 %v610
    %v650 = vunpack.c.l.b16 %v611
    %v651 = vunpack.c.l.b16 %v612
    %v652 = vunpack.c.l.b16 %v613
    %v653 = vunpack.c.l.b16 %v614
    %v654 = vunpack.c.l.b16 %v615
    %v655 = vunpack.c.l.b16 %v616
    %v656 = vunpack.c.l.b16 %v617
    %v657 = vunpack.c.l.b16 %v618
    %v658 = vunpack.c.l.b16 %v619
    %v659 = vpack.c.b16 %v644, %v643
    %v660 = vpack.c.b16 %v646, %v645
    %v661 = vpack.c.b16 %v648, %v647
    %v662 = vpack.c.b16 %v650, %v649
    %v663 = vpack.c.b16 %v652, %v651
    %v664 = vpack.c.b16 %v654, %v653
    %v665 = vpack.c.b16 %v656, %v655
    %v666 = vpack.c.b16 %v658, %v657
    %675 = vmatprep.subr.bf16.mxu0 0
    %676 = vmatpush1.bf16.msra.mxu0 %v659
    %677 = vmatprep.subr.bf16.mxu0 0
    %678 = vmatpush1.bf16.msra.mxu0 %v660
    %679 = vmatprep.subr.bf16.mxu0 0
    %680 = vmatpush1.bf16.msra.mxu0 %v661
    %681 = vmatprep.subr.bf16.mxu0 0
    %682 = vmatpush1.bf16.msra.mxu0 %v662
    %683 = vmatprep.subr.bf16.mxu0 0
    %684 = vmatpush1.bf16.msra.mxu0 %v663
    %685 = vmatprep.subr.bf16.mxu0 0
    %686 = vmatpush1.bf16.msra.mxu0 %v664
    %687 = vmatprep.subr.bf16.mxu0 0
    %688 = vmatpush1.bf16.msra.mxu0 %v665
    %689 = vmatprep.subr.bf16.mxu0 0
    %690 = vmatpush1.bf16.msra.mxu0 %v666
    %691 = vmatprep.subr.bf16.mxu0 0
    %692 = vmatpush1.bf16.msra.mxu0 0
    %693 = vmatprep.subr.bf16.mxu0 0
    %694 = vmatpush1.bf16.msra.mxu0 0
    %695 = vmatprep.subr.bf16.mxu0 0
    %696 = vmatpush1.bf16.msra.mxu0 0
    %697 = vmatprep.subr.bf16.mxu0 0
    %698 = vmatpush1.bf16.msra.mxu0 0
    %699 = vmatprep.subr.bf16.mxu0 0
    %700 = vmatpush1.bf16.msra.mxu0 0
    %701 = vmatprep.subr.bf16.mxu0 0
    %702 = vmatpush1.bf16.msra.mxu0 0
    %703 = vmatprep.subr.bf16.mxu0 0
    %704 = vmatpush1.bf16.msra.mxu0 0
    %705 = vmatprep.subr.bf16.mxu0 0
    %706 = vmatpush1.bf16.msra.mxu0 0
    %707 = vmatprep.mubr.bf16.mxu0 0
    %708 = vmatmul.mubr.bf16.gmra.mrb[0].mxu0 %v603
    %v709 = vpop.f32.mrb[0].mxu0
    %v710 = vadd.f32 %v625, %v709
    %v711 = vpop.f32.mrb[0].mxu0
    %v712 = vpop.f32.mrb[0].mxu0
    %v713 = vpop.f32.mrb[0].mxu0
    %714 = vdwg.mxu0
    %715 = vst [vmem:[#allocation13] sm:$0xff] %v710
    // Predicated region
    $region66: #{tpu_custom_call.1} parent=1 // pred_check
      _
    $region67: #{tpu_custom_call.1} parent=1 // pred_check_branch
      %717 = sbr.rel (0) target = $region69
    $region68: #{tpu_custom_call.1} parent=1 // pred_region
      %s719 = ssub.s32 128, 128
      %720 = vsyncadd [#allocation4], %s719
      %s722 = sshll.u32 [#allocation13], 4
      %s723 = int_to_ptr.vmem [resolvable:$true] %s722
      %725 = dma.vmem_to_hbm [thread:$0]  %s723, 128, %s10, [#allocation4]
    $region69: #{tpu_custom_call.1} parent=1 // pred_fallthru
      _
    // Predicated region
    $region70: #{tpu_custom_call.1} parent=1 // pred_check
      _
    $region71: #{tpu_custom_call.1} parent=1 // pred_check_branch
      %727 = sbr.rel (0) target = $region73
    $region72: #{tpu_custom_call.1} parent=1 // pred_region
      %s729 = ssub.s32 128, 128
      %730 = vsyncadd [#allocation15], %s729
      %s732 = sshll.u32 [#allocation14], 4
      %s733 = int_to_ptr.vmem [resolvable:$true] %s732
      %735 = dma.vmem_to_hbm [thread:$0]  %s733, 128, %s11, [#allocation15]
    $region73: #{tpu_custom_call.1} parent=1 // pred_fallthru
      _
    // Predicated region
    $region74: #{tpu_custom_call.1} parent=1 // pred_check
      _
    $region75: #{tpu_custom_call.1} parent=1 // pred_check_branch
      %737 = sbr.rel (0) target = $region77
    $region76: #{tpu_custom_call.1} parent=1 // pred_region
      %738 = dma.done [#allocation4], 128
    $region77: #{tpu_custom_call.1} parent=1 // pred_fallthru
      _
    // Predicated region
    $region78: #{tpu_custom_call.1} parent=1 // pred_check
      _
    $region79: #{tpu_custom_call.1} parent=1 // pred_check_branch
      %740 = sbr.rel (0) target = $region81
    $region80: #{tpu_custom_call.1} parent=1 // pred_region
      %741 = dma.done [#allocation15], 128
    $region81: #{tpu_custom_call.1} parent=1 // pred_fallthru
      _
    %742 = vsyncpa [#allocation3], 1
    %743 = vsyncpa [#allocation6], 1
    %744 = vsyncpa [#allocation9], 1
    %745 = vsyncpa [#allocation12], 1
    %746 = vsyncpa [#allocation4], 1
    %747 = vsyncpa [#allocation15], 1

</llo_original>
